<compile_context>
chip_gen: v6e
topology: v6e:2x2x1
jax: 0.10.0
libtpu: 0.0.40
codegen_flags: <defaults>
</compile_context>

<pallas_src>
import functools
import math

import jax
import jax.numpy as jnp
import numpy as np
from jax import lax
from jax.experimental import pallas as pl
from jax.experimental.pallas import tpu as pltpu

BN_EPS = 1e-5


# ---------------------------------------------------------------------------
# Fused MyBasicBlock kernel (one batch element / whole feature map per step)
# ---------------------------------------------------------------------------
def _block_kernel(*refs, K, stride, pad, Ho, Wo, Cin, Cmid, Cout, mid_w,
                  has_ds):
    if has_ds:
        (x_ref, w1_ref, b1_ref, w2_ref, b2_ref,
         wd_ref, bd_ref, o_ref, mid_ref) = refs
    else:
        x_ref, w1_ref, b1_ref, w2_ref, b2_ref, o_ref, mid_ref = refs

    x = x_ref[0]                           # (stride, Hs, Wpa*Cin) f32
    xb = x.astype(jnp.bfloat16)            # bf16 feed for the MXU

    # ---- conv1 (BN1 scale folded into w1) + shift + ReLU -------------------
    # One deep matmul: concat K row-shifted slabs along the contraction axis.
    slabs = [xb[dy % stride, dy // stride:dy // stride + Ho, :]
             for dy in range(K)]
    col1 = slabs[0] if K == 1 else jnp.concatenate(slabs, axis=-1)
    o1 = jnp.dot(col1, w1_ref[...], preferred_element_type=jnp.float32)
    o1 = jnp.maximum(o1 + b1_ref[...], 0.0)              # (Ho, Wo*Cmid) f32

    # ---- stash the (padded) conv1 output in VMEM scratch for conv2 ---------
    mid_ref[...] = jnp.zeros((Ho + 2 * pad, mid_w * Cmid), jnp.float32)
    mid_ref[pad:pad + Ho, pad * Cmid:pad * Cmid + Wo * Cmid] = o1

    # ---- conv2 (BN2 scale folded into w2) + shift ---------------------------
    slabs2 = [mid_ref[dy:dy + Ho, :].astype(jnp.bfloat16) for dy in range(K)]
    col2 = slabs2[0] if K == 1 else jnp.concatenate(slabs2, axis=-1)
    acc = jnp.dot(col2, w2_ref[...], preferred_element_type=jnp.float32)
    acc = acc + b2_ref[...]                               # (Ho, Wo*Cout) f32

    # ---- identity / 1x1 strided downsample ----------------------------------
    if has_ds:
        dslab = xb[pad % stride, pad // stride:pad // stride + Ho, :]
        idn = jnp.dot(dslab, wd_ref[...], preferred_element_type=jnp.float32)
        idn = idn + bd_ref[...]
    else:
        # no downsample => stride == 1 and Cin == Cout: identity is the
        # un-padded interior of the block input, kept in f32.
        idn = x[0, pad:pad + Ho, pad * Cin:pad * Cin + Wo * Cin]

    # residual add + ReLU, lane-dense (Ho, Wo*Cout) store
    o_ref[0] = jnp.maximum(acc + idn, 0.0).astype(o_ref.dtype)


# ---------------------------------------------------------------------------
# Wrapper: input prep (pad / flatten / even-odd row split) + pallas_call
# ---------------------------------------------------------------------------
def _prep_input(x_nhwc, pad, Wpa, stride, Hs):
    """Pad, flatten (W,C)->W*C (lane-aligned), split rows by stride parity."""
    B, H, W, C = x_nhwc.shape
    xp = jnp.pad(x_nhwc, ((0, 0), (pad, pad), (pad, Wpa - W - pad), (0, 0)))
    rows = xp.shape[1]
    total = stride * Hs
    if rows < total:
        xp = jnp.pad(xp, ((0, 0), (0, total - rows), (0, 0), (0, 0)))
    elif rows > total:
        xp = xp[:, :total]
    xf = xp.reshape(B, total, Wpa * C)
    if stride == 1:
        return xf[:, None]                                 # (B, 1, Hs, Wpa*C)
    xf = xf.reshape(B, Hs, stride, Wpa * C)
    return jnp.transpose(xf, (0, 2, 1, 3))                 # (B, s, Hs, Wpa*C)


def fused_basic_block(x_nhwc, blk):
    B = x_nhwc.shape[0]
    K, stride, pad = blk["K"], blk["stride"], blk["pad"]
    Cin, Cmid, Cout = blk["Cin"], blk["Cmid"], blk["Cout"]
    Ho, Wo = blk["Ho"], blk["Wo"]
    Hs, Wpa, mid_w = blk["Hs"], blk["Wpa"], blk["mid_w"]

    xs = _prep_input(x_nhwc, pad, Wpa, stride, Hs)         # (B, s, Hs, Wpa*Cin)
    has_ds = blk["wd"] is not None

    kernel = functools.partial(
        _block_kernel, K=K, stride=stride, pad=pad, Ho=Ho, Wo=Wo,
        Cin=Cin, Cmid=Cmid, Cout=Cout, mid_w=mid_w, has_ds=has_ds)

    in_specs = [
        pl.BlockSpec((1, stride, Hs, Wpa * Cin), lambda b: (b, 0, 0, 0)),
        pl.BlockSpec(blk["w1"].shape, lambda b: (0, 0)),
        pl.BlockSpec(blk["b1"].shape, lambda b: (0, 0)),
        pl.BlockSpec(blk["w2"].shape, lambda b: (0, 0)),
        pl.BlockSpec(blk["b2"].shape, lambda b: (0, 0)),
    ]
    args = [xs, blk["w1"], blk["b1"], blk["w2"], blk["b2"]]
    if has_ds:
        in_specs += [pl.BlockSpec(blk["wd"].shape, lambda b: (0, 0)),
                     pl.BlockSpec(blk["bd"].shape, lambda b: (0, 0))]
        args += [blk["wd"], blk["bd"]]

    # TODO(synk): for realistic opencood feature-map sizes, add an output-row
    # tile axis (with a K-1 halo) to the grid so per-step blocks fit v7x's
    # 64 MiB VMEM and both of its TensorCores get work; at 16x16x16 one image
    # per grid step fits comfortably on every TPU generation.
    out = pl.pallas_call(
        kernel,
        out_shape=jax.ShapeDtypeStruct((B, Ho, Wo * Cout), jnp.float32),
        grid=(B,),
        in_specs=in_specs,
        out_specs=pl.BlockSpec((1, Ho, Wo * Cout), lambda b: (b, 0, 0)),
        scratch_shapes=[pltpu.VMEM((Ho + 2 * pad, mid_w * Cmid), jnp.float32)],
        compiler_params=pltpu.CompilerParams(
            dimension_semantics=("parallel",)),
    )(*args)
    return out.reshape(B, Ho, Wo, Cout)


# ---------------------------------------------------------------------------
# Parameter construction, mirroring MyResNetModified.__init__ / _make_layer
# ---------------------------------------------------------------------------
def _round_up(v, m):
    return ((v + m - 1) // m) * m


def _lane_unit(c):
    # smallest column multiple m such that m*c is a multiple of 128 lanes
    return 128 // math.gcd(c, 128)


def _kaiming(key, K, cin, cout):
    # kaiming_normal_(mode='fan_out', relu): std = sqrt(2 / (cout*K*K))
    std = float(np.sqrt(2.0 / (cout * K * K)))
    return np.asarray(jax.random.normal(key, (K, K, cin, cout), jnp.float32)) * std


def _bn_fold(planes):
    # eval-mode BN with freshly initialised params/stats:
    # gamma=1, beta=0, running_mean=0, running_var=1
    # TODO(synk): training-mode (batch-statistics) BatchNorm is not implemented.
    gamma = np.ones(planes, np.float32)
    beta = np.zeros(planes, np.float32)
    mean = np.zeros(planes, np.float32)
    var = np.ones(planes, np.float32)
    scale = gamma / np.sqrt(var + BN_EPS)
    shift = beta - mean * scale
    return scale, shift


def _band_weight(w_kkio, scale, w_row, w_out, stride, col_offset):
    """Banded 'row-im2col' weight (K*w_row*Ci, w_out*Co) with BN scale folded.

    band[dy*w_row*Ci + (stride*ox + dx + col_offset)*Ci + ci, ox*Co + co]
        = w[dy, dx, ci, co] * scale[co]
    """
    K, _, Ci, Co = w_kkio.shape
    ws = w_kkio * scale[None, None, None, :]
    band = np.zeros((K, w_row, Ci, w_out, Co), np.float32)
    for dx in range(K):
        for ox in range(w_out):
            band[:, stride * ox + dx + col_offset, :, ox, :] = ws[:, dx, :, :]
    return jnp.asarray(band.reshape(K * w_row * Ci, w_out * Co), jnp.bfloat16)


def _bias_row(shift, w_out):
    return jnp.asarray(np.tile(shift, w_out)[None, :], jnp.float32)


def _build_block(key, K, stride, cin, planes, h, w):
    pad = (K - 1) // 2                       # dilation == 1
    need_ds = stride != 1 or cin != planes
    Ho = (h + 2 * pad - K) // stride + 1
    Wo = (w + 2 * pad - K) // stride + 1
    Wpa = _round_up(w + 2 * pad, _lane_unit(cin))       # lane-aligned input row
    mid_w = _round_up(Wo + 2 * pad, _lane_unit(planes))  # lane-aligned mid row
    Hs = (K - 1) // stride + Ho                          # rows per stride parity

    k1, k2, k3 = jax.random.split(key, 3)
    w1 = _kaiming(k1, K, cin, planes)
    w2 = _kaiming(k2, K, planes, planes)
    s1, b1 = _bn_fold(planes)
    s2, b2 = _bn_fold(planes)

    blk = {
        "K": K, "pad": pad, "stride": stride,
        "Cin": cin, "Cmid": planes, "Cout": planes,
        "Ho": Ho, "Wo": Wo, "Hs": Hs, "Wpa": Wpa, "mid_w": mid_w,
        "w1": _band_weight(w1, s1, Wpa, Wo, stride, 0),
        "b1": _bias_row(b1, Wo),
        "w2": _band_weight(w2, s2, mid_w, Wo, 1, 0),
        "b2": _bias_row(b2, Wo),
        "wd": None, "bd": None,
        "raw": {"w1": jnp.asarray(w1), "w2": jnp.asarray(w2), "wd": None},
    }
    if need_ds:
        wd = _kaiming(k3, 1, cin, planes)
        sd, bd = _bn_fold(planes)
        blk["wd"] = _band_weight(wd, sd, Wpa, Wo, stride, pad)
        blk["bd"] = _bias_row(bd, Wo)
        blk["raw"]["wd"] = jnp.asarray(wd)
    return blk


def build_resnet_params(key, layers, layer_strides, num_filters, inplanes, H, W):
    """Mirrors MyResNetModified.__init__ / _make_layer (kernel_size = 2*i+3)."""
    net = []
    cur_in = inplanes
    for i in range(len(num_filters)):
        K = 2 * i + 3
        planes = num_filters[i]
        blocks = []
        h, w = H, W            # every layer{i} consumes the ORIGINAL input
        for b in range(layers[i]):
            s = layer_strides[i] if b == 0 else 1
            key, sub = jax.random.split(key)
            blk = _build_block(sub, K, s, cur_in, planes, h, w)
            blocks.append(blk)
            cur_in = planes
            h, w = blk["Ho"], blk["Wo"]
        net.append({"blocks": blocks})
    return net


# ---------------------------------------------------------------------------
# MyResNetModified forward: every layer{i} applied to the ORIGINAL input x
# ---------------------------------------------------------------------------
def my_resnet_modified_forward(x_nchw, net):
    x = jnp.transpose(x_nchw, (0, 2, 3, 1))          # NCHW -> NHWC (once)
    feats = []
    for layer in net:
        out = x
        for blk in layer["blocks"]:
            out = fused_basic_block(out, blk)
        feats.append(jnp.transpose(out, (0, 3, 1, 2)))  # NHWC -> NCHW
    return feats


# ---------------------------------------------------------------------------
# Pure-JAX reference (f32 lax.conv) for a correctness cross-check
# ---------------------------------------------------------------------------
def _ref_forward(x_nchw, net):
    bn = float(1.0 / np.sqrt(1.0 + BN_EPS))

    def conv(v, w, stride, pad):
        return lax.conv_general_dilated(
            v, w, (stride, stride), [(pad, pad), (pad, pad)],
            dimension_numbers=("NHWC", "HWIO", "NHWC"),
            precision=lax.Precision.HIGHEST)

    x = jnp.transpose(x_nchw, (0, 2, 3, 1))
    feats = []
    for layer in net:
        out = x
        for blk in layer["blocks"]:
            r, s, p = blk["raw"], blk["stride"], blk["pad"]
            o = jnp.maximum(conv(out, r["w1"], s, p) * bn, 0.0)
            o = conv(o, r["w2"], 1, p) * bn
            idn = conv(out, r["wd"], s, 0) * bn if r["wd"] is not None else out
            out = jnp.maximum(o + idn, 0.0)
        feats.append(jnp.transpose(out, (0, 3, 1, 2)))
    return feats


if __name__ == "__main__":
    # Small config consistent with the module:
    #   layernum=3 -> kernel sizes 3, 5, 7
    #   all num_filters == inplanes so every layer accepts the original x
    #   (as the module's forward requires).
    B, C, H, W = 2, 16, 16, 16
    layers = [1, 1, 1]
    layer_strides = [1, 2, 1]
    num_filters = [16, 16, 16]
    inplanes = C

    params = build_resnet_params(
        jax.random.PRNGKey(0), layers, layer_strides, num_filters, inplanes,
        H, W)
    x = jax.random.normal(jax.random.PRNGKey(0), (B, C, H, W), jnp.float32)

    outs = jax.block_until_ready(my_resnet_modified_forward(x, params))

    expected = [(B, 16, 16, 16), (B, 16, 8, 8), (B, 16, 16, 16)]
    assert [tuple(o.shape) for o in outs] == expected, \
        [tuple(o.shape) for o in outs]
    assert all(bool(jnp.all(jnp.isfinite(o))) for o in outs)

    # cross-check against a pure-JAX f32 reference (tolerance covers the bf16
    # MXU feed inside the Pallas kernels)
    refs = _ref_forward(x, params)
    for o, r in zip(outs, refs):
        err = float(jnp.max(jnp.abs(o - r)))
        assert err < 0.15, f"max abs err vs reference: {err}"

    print("KERNEL_OK")
</pallas_src>

<mosaic_0001>
module attributes {stable_mosaic.version = 11 : i64} {
  func.func @_block_kernel(%arg0: i32, %arg1: memref<1x1x18x384xf32, #tpu.memory_space<vmem>>, %arg2: memref<1152x256xbf16, #tpu.memory_space<vmem>>, %arg3: memref<1x256xf32, #tpu.memory_space<vmem>>, %arg4: memref<1152x256xbf16, #tpu.memory_space<vmem>>, %arg5: memref<1x256xf32, #tpu.memory_space<vmem>>, %arg6: memref<1x16x256xf32, #tpu.memory_space<vmem>>, %arg7: memref<18x384xf32, #tpu.memory_space<vmem>>) attributes {dimension_semantics = [#tpu.dimension_semantics<parallel>], iteration_bounds = array<i64: 2>, scalar_prefetch = 0 : i64, scratch_operands = 1 : i64, tpu.core_type = #tpu.core_type<tc>, window_params = [{transform_indices = @transform_0, window_bounds = array<i64: 1, 1, 18, 384>}, {pipeline_mode = #tpu.pipeline_mode<synchronous>, transform_indices = @transform_1, window_bounds = array<i64: 1152, 256>}, {pipeline_mode = #tpu.pipeline_mode<synchronous>, transform_indices = @transform_2, window_bounds = array<i64: 1, 256>}, {pipeline_mode = #tpu.pipeline_mode<synchronous>, transform_indices = @transform_3, window_bounds = array<i64: 1152, 256>}, {pipeline_mode = #tpu.pipeline_mode<synchronous>, transform_indices = @transform_4, window_bounds = array<i64: 1, 256>}, {transform_indices = @transform_5, window_bounds = array<i64: 1, 16, 256>}]} {
    %c0 = arith.constant 0 : index
    %c0_0 = arith.constant 0 : index
    %c0_1 = arith.constant 0 : index
    %c0_2 = arith.constant 0 : index
    %0 = vector.load %arg1[%c0, %c0_0, %c0_1, %c0_2] : memref<1x1x18x384xf32, #tpu.memory_space<vmem>>, vector<1x1x18x384xf32>
    %1 = vector.shape_cast %0 : vector<1x1x18x384xf32> to vector<1x18x384xf32>
    %2 = arith.truncf %1 : vector<1x18x384xf32> to vector<1x18x384xbf16>
    %3 = vector.extract_strided_slice %2 {offsets = [0, 0, 0], sizes = [1, 16, 384], strides = [1, 1, 1]} : vector<1x18x384xbf16> to vector<1x16x384xbf16>
    %4 = vector.shape_cast %3 : vector<1x16x384xbf16> to vector<16x384xbf16>
    %5 = vector.extract_strided_slice %2 {offsets = [0, 1, 0], sizes = [1, 16, 384], strides = [1, 1, 1]} : vector<1x18x384xbf16> to vector<1x16x384xbf16>
    %6 = vector.shape_cast %5 : vector<1x16x384xbf16> to vector<16x384xbf16>
    %7 = vector.extract_strided_slice %2 {offsets = [0, 2, 0], sizes = [1, 16, 384], strides = [1, 1, 1]} : vector<1x18x384xbf16> to vector<1x16x384xbf16>
    %8 = vector.shape_cast %7 : vector<1x16x384xbf16> to vector<16x384xbf16>
    %9 = tpu.concatenate %4, %6, %8 in 1 : vector<16x384xbf16>, vector<16x384xbf16>, vector<16x384xbf16> -> vector<16x1152xbf16>
    %c0_3 = arith.constant 0 : index
    %c0_4 = arith.constant 0 : index
    %10 = vector.load %arg2[%c0_3, %c0_4] : memref<1152x256xbf16, #tpu.memory_space<vmem>>, vector<1152x256xbf16>
    %cst = arith.constant dense<0.000000e+00> : vector<16x256xf32>
    %11 = tpu.matmul %9, %10, %cst {dimension_numbers = #tpu.dot_dimension_numbers<[1], [0], [0], [1], [0, 0, 1, 1], [], []>} : vector<16x1152xbf16>, vector<1152x256xbf16>, vector<16x256xf32> -> vector<16x256xf32>
    %c0_5 = arith.constant 0 : index
    %c0_6 = arith.constant 0 : index
    %12 = vector.load %arg3[%c0_5, %c0_6] : memref<1x256xf32, #tpu.memory_space<vmem>>, vector<1x256xf32>
    %13 = vector.broadcast %12 : vector<1x256xf32> to vector<16x256xf32>
    %14 = arith.addf %11, %13 : vector<16x256xf32>
    %cst_7 = arith.constant 0.000000e+00 : f32
    %15 = vector.broadcast %cst_7 : f32 to vector<16x256xf32>
    %16 = arith.maximumf %14, %15 : vector<16x256xf32>
    %cst_8 = arith.constant 0.000000e+00 : f32
    %17 = vector.broadcast %cst_8 : f32 to vector<18x384xf32>
    %c0_9 = arith.constant 0 : index
    %c0_10 = arith.constant 0 : index
    %18 = vector.load %arg7[%c0_9, %c0_10] : memref<18x384xf32, #tpu.memory_space<vmem>>, vector<18x384xf32>
    tpu.vector_store %arg7[%c0_9, %c0_10], %17 {strides = array<i32>} : memref<18x384xf32, #tpu.memory_space<vmem>>, vector<18x384xf32>,
    %c1 = arith.constant 1 : index
    %c16 = arith.constant 16 : index
    %19 = vector.load %arg7[%c1, %c16] : memref<18x384xf32, #tpu.memory_space<vmem>>, vector<16x256xf32>
    tpu.vector_store %arg7[%c1, %c16], %16 {strides = array<i32>} : memref<18x384xf32, #tpu.memory_space<vmem>>, vector<16x256xf32>,
    %c0_11 = arith.constant 0 : index
    %c0_12 = arith.constant 0 : index
    %20 = vector.load %arg7[%c0_11, %c0_12] : memref<18x384xf32, #tpu.memory_space<vmem>>, vector<16x384xf32>
    %21 = arith.truncf %20 : vector<16x384xf32> to vector<16x384xbf16>
    %c1_13 = arith.constant 1 : index
    %c0_14 = arith.constant 0 : index
    %22 = vector.load %arg7[%c1_13, %c0_14] : memref<18x384xf32, #tpu.memory_space<vmem>>, vector<16x384xf32>
    %23 = arith.truncf %22 : vector<16x384xf32> to vector<16x384xbf16>
    %c2 = arith.constant 2 : index
    %c0_15 = arith.constant 0 : index
    %24 = vector.load %arg7[%c2, %c0_15] : memref<18x384xf32, #tpu.memory_space<vmem>>, vector<16x384xf32>
    %25 = arith.truncf %24 : vector<16x384xf32> to vector<16x384xbf16>
    %26 = tpu.concatenate %21, %23, %25 in 1 : vector<16x384xbf16>, vector<16x384xbf16>, vector<16x384xbf16> -> vector<16x1152xbf16>
    %c0_16 = arith.constant 0 : index
    %c0_17 = arith.constant 0 : index
    %27 = vector.load %arg4[%c0_16, %c0_17] : memref<1152x256xbf16, #tpu.memory_space<vmem>>, vector<1152x256xbf16>
    %cst_18 = arith.constant dense<0.000000e+00> : vector<16x256xf32>
    %28 = tpu.matmul %26, %27, %cst_18 {dimension_numbers = #tpu.dot_dimension_numbers<[1], [0], [0], [1], [0, 0, 1, 1], [], []>} : vector<16x1152xbf16>, vector<1152x256xbf16>, vector<16x256xf32> -> vector<16x256xf32>
    %c0_19 = arith.constant 0 : index
    %c0_20 = arith.constant 0 : index
    %29 = vector.load %arg5[%c0_19, %c0_20] : memref<1x256xf32, #tpu.memory_space<vmem>>, vector<1x256xf32>
    %30 = vector.broadcast %29 : vector<1x256xf32> to vector<16x256xf32>
    %31 = arith.addf %28, %30 : vector<16x256xf32>
    %32 = vector.extract_strided_slice %1 {offsets = [0, 1, 16], sizes = [1, 16, 256], strides = [1, 1, 1]} : vector<1x18x384xf32> to vector<1x16x256xf32>
    %33 = vector.shape_cast %32 : vector<1x16x256xf32> to vector<16x256xf32>
    %34 = arith.addf %31, %33 : vector<16x256xf32>
    %cst_21 = arith.constant 0.000000e+00 : f32
    %35 = vector.broadcast %cst_21 : f32 to vector<16x256xf32>
    %36 = arith.maximumf %34, %35 : vector<16x256xf32>
    %c0_22 = arith.constant 0 : index
    %c0_23 = arith.constant 0 : index
    %c0_24 = arith.constant 0 : index
    %37 = vector.load %arg6[%c0_22, %c0_23, %c0_24] : memref<1x16x256xf32, #tpu.memory_space<vmem>>, vector<1x16x256xf32>
    %38 = vector.shape_cast %37 : vector<1x16x256xf32> to vector<16x256xf32>
    %39 = vector.shape_cast %36 : vector<16x256xf32> to vector<1x16x256xf32>
    tpu.vector_store %arg6[%c0_22, %c0_23, %c0_24], %39 {strides = array<i32>} : memref<1x16x256xf32, #tpu.memory_space<vmem>>, vector<1x16x256xf32>,
    return
  }
  func.func @transform_0(%arg0: i32) -> (i32, i32, i32, i32) {
    %c0_i32 = arith.constant 0 : i32
    %c0_i32_0 = arith.constant 0 : i32
    %c0_i32_1 = arith.constant 0 : i32
    %c0_i32_2 = arith.constant 0 : i32
    return %arg0, %c0_i32, %c0_i32_0, %c0_i32_1 : i32, i32, i32, i32
  }
  func.func @transform_1(%arg0: i32) -> (i32, i32) {
    %c0_i32 = arith.constant 0 : i32
    %c0_i32_0 = arith.constant 0 : i32
    %c0_i32_1 = arith.constant 0 : i32
    return %c0_i32, %c0_i32_0 : i32, i32
  }
  func.func @transform_2(%arg0: i32) -> (i32, i32) {
    %c0_i32 = arith.constant 0 : i32
    %c0_i32_0 = arith.constant 0 : i32
    %c0_i32_1 = arith.constant 0 : i32
    return %c0_i32, %c0_i32_0 : i32, i32
  }
  func.func @transform_3(%arg0: i32) -> (i32, i32) {
    %c0_i32 = arith.constant 0 : i32
    %c0_i32_0 = arith.constant 0 : i32
    %c0_i32_1 = arith.constant 0 : i32
    return %c0_i32, %c0_i32_0 : i32, i32
  }
  func.func @transform_4(%arg0: i32) -> (i32, i32) {
    %c0_i32 = arith.constant 0 : i32
    %c0_i32_0 = arith.constant 0 : i32
    %c0_i32_1 = arith.constant 0 : i32
    return %c0_i32, %c0_i32_0 : i32, i32
  }
  func.func @transform_5(%arg0: i32) -> (i32, i32, i32) {
    %c0_i32 = arith.constant 0 : i32
    %c0_i32_0 = arith.constant 0 : i32
    %c0_i32_1 = arith.constant 0 : i32
    return %arg0, %c0_i32, %c0_i32_0 : i32, i32, i32
  }
}

</mosaic_0001>

<llo_original>
// kernel: tpu_custom_call.1
$region0: #{tpu_custom_call.1}
  #allocation0 [shape = 'u32[]', space=smem, size = 0x4, offset = 0x4, fixed_abs, tag = 'smem constant byte address 0x4 - core index']
  #allocation1 [shape = 'u32[144,128]{1,0:T(1,128)}', space=vmem, size = 0x12000, scoped, tag = 'internal scratch']
  #allocation2 [shape = 'f32[18,384]{1,0:T(8,128)}', space=vmem, size = 0x9000, scoped, tag = 'scratch operand']
  %s0 = inlined_call_operand.vmem [shape: f32[2,1,18,384], index: 0, kind: input, shape index: {}]
  %s1 = inlined_call_operand.hbm [shape: bf16[1152,256], index: 1, kind: input, shape index: {}]
  %s2 = inlined_call_operand.vmem [shape: f32[1,256], index: 2, kind: input, shape index: {}]
  %s3 = inlined_call_operand.hbm [shape: bf16[1152,256], index: 3, kind: input, shape index: {}]
  %s4 = inlined_call_operand.vmem [shape: f32[1,256], index: 4, kind: input, shape index: {}]
  %s5 = inlined_call_operand.hbm [shape: f32[2,16,256], index: 5, kind: output, shape index: {}]
  %s6 = sld [smem:[#allocation0]]
  $region61: #{tpu_custom_call.1} parent=0
    _
  %s8 = ssub.s32 1, %s6
  %s9 = scalar_select 0, %s8, %s6
  $region1: #{tpu_custom_call.1} parent=0
    #allocation3 [shape = 'u8[589824]{0}', space=vmem, size = 0x90000, scoped, tag = 'input window, operand 1, single buffered']
    #allocation4 [shape = 's32[2]{0}', space=sflag, size = 0x8, scoped, tag = 'scoped memory for tpu_custom_call.1']
    #allocation5 [shape = 's32[2]{0}', space=sflag, size = 0x8, scoped, tag = 'scoped memory for tpu_custom_call.1']
    #allocation6 [shape = 'u8[589824]{0}', space=vmem, size = 0x90000, scoped, tag = 'input window, operand 3, single buffered']
    #allocation7 [shape = 's32[1]{0}', space=sflag, size = 0x4, scoped, tag = 'scoped memory for tpu_custom_call.1']
    #allocation8 [shape = 'u8[32768]{0}', space=vmem, size = 0x8000, scoped, tag = 'output window, operand 0']
    %10 = vsyncpa [#allocation4], 0
    %11 = vsyncpa [#allocation7], 0
    %12 = vsyncpa [#allocation5], 0
    %s13 = scalar_lea.sflag [#allocation5], 1
    %14 = vsyncpa %s13, 0
    loop: start=0, step=1, limit=4
    $region2: #{tpu_custom_call.1} parent=1 // loop_pre_header
      _
    $region3: #{tpu_custom_call.1} parent=1 // loop_header
      %s16 = sphi 0, %s20
      %p17 = scmp.ge.s32.totalorder %s16, 4
      %s26 = sphi 0, %s28
      %s29 = sphi 0, %s26
      %s30 = sphi 0, %s29
      %s46 = sphi 0, %s30
      %s50 = sphi 0, %s50
      %s52 = sphi 0, %s50
      %s53 = sphi 0, %s52
      %s67 = sphi 0, %s53
      %s71 = sphi 0, %s71
      %s73 = sphi 0, %s71
      %s74 = sphi 0, %s73
      %s88 = sphi 0, %s74
      %s92 = sphi 0, %s92
      %s94 = sphi 0, %s92
      %s95 = sphi 0, %s94
      %s109 = sphi 0, %s95
      %s113 = sphi 0, %s113
      %s115 = sphi 0, %s113
      %s116 = sphi 0, %s115
      %s130 = sphi 0, %s116
      %s136 = sphi 0, %s138
      %s139 = sphi 0, %s136
      %s140 = sphi 0, %s139
      %s156 = sphi 0, %s140
    $region4: #{tpu_custom_call.1} parent=1 // loop_header_branch
      %19 = sbr.rel (%p17) target = $region8
    $region5: #{tpu_custom_call.1} parent=1 // loop_body
      %s21 = ssub.s32 %s16, 1
      %s22 = ssub.s32 %s16, 2
      %s23 = sadd.s32 %s16, 1
      %s24 = ssub.s32 %s16, %s23
      %p25 = scmp.eq.s32.totalorder %s24, 0
      %s27 = sadd.s32 %s26, 1
      %s28 = scalar_select %p25, %s26, %s27
      %p31 = pneg %p25
      %p32 = scmp.eq.s32.totalorder %s16, 1
      %p33 = por %p31, %p32
      %p34 = scmp.ne.s32.totalorder %s26, %s29
      %p35 = scmp.eq.s32.totalorder %s16, 0
      %p36 = por %p34, %p35
      %p37 = scmp.ne.s32.totalorder %s26, %s29
      %p38 = scmp.eq.s32.totalorder %s21, 1
      %p39 = por %p37, %p38
      %p40 = scmp.ne.s32.totalorder %s29, %s30
      %p41 = scmp.eq.s32.totalorder %s21, 0
      %p42 = por %p40, %p41
      %p43 = scmp.ne.s32.totalorder %s29, %s30
      %p44 = scmp.eq.s32.totalorder %s22, 1
      %p45 = por %p43, %p44
      %p47 = scmp.ne.s32.totalorder %s30, %s46
      %p48 = scmp.eq.s32.totalorder %s22, 0
      %p49 = por %p47, %p48
      %s51 = sadd.s32 %s50, 1
      %p54 = scmp.eq.s32.totalorder %s16, 1
      %p55 = scmp.ne.s32.totalorder %s50, %s52
      %p56 = scmp.eq.s32.totalorder %s16, 0
      %p57 = por %p55, %p56
      %p58 = scmp.ne.s32.totalorder %s50, %s52
      %p59 = scmp.eq.s32.totalorder %s21, 1
      %p60 = por %p58, %p59
      %p61 = scmp.ne.s32.totalorder %s52, %s53
      %p62 = scmp.eq.s32.totalorder %s21, 0
      %p63 = por %p61, %p62
      %p64 = scmp.ne.s32.totalorder %s52, %s53
      %p65 = scmp.eq.s32.totalorder %s22, 1
      %p66 = por %p64, %p65
      %p68 = scmp.ne.s32.totalorder %s53, %s67
      %p69 = scmp.eq.s32.totalorder %s22, 0
      %p70 = por %p68, %p69
      %s72 = sadd.s32 %s71, 1
      %p75 = scmp.eq.s32.totalorder %s16, 1
      %p76 = scmp.ne.s32.totalorder %s71, %s73
      %p77 = scmp.eq.s32.totalorder %s16, 0
      %p78 = por %p76, %p77
      %p79 = scmp.ne.s32.totalorder %s71, %s73
      %p80 = scmp.eq.s32.totalorder %s21, 1
      %p81 = por %p79, %p80
      %p82 = scmp.ne.s32.totalorder %s73, %s74
      %p83 = scmp.eq.s32.totalorder %s21, 0
      %p84 = por %p82, %p83
      %p85 = scmp.ne.s32.totalorder %s73, %s74
      %p86 = scmp.eq.s32.totalorder %s22, 1
      %p87 = por %p85, %p86
      %p89 = scmp.ne.s32.totalorder %s74, %s88
      %p90 = scmp.eq.s32.totalorder %s22, 0
      %p91 = por %p89, %p90
      %s93 = sadd.s32 %s92, 1
      %p96 = scmp.eq.s32.totalorder %s16, 1
      %p97 = scmp.ne.s32.totalorder %s92, %s94
      %p98 = scmp.eq.s32.totalorder %s16, 0
      %p99 = por %p97, %p98
      %p100 = scmp.ne.s32.totalorder %s92, %s94
      %p101 = scmp.eq.s32.totalorder %s21, 1
      %p102 = por %p100, %p101
      %p103 = scmp.ne.s32.totalorder %s94, %s95
      %p104 = scmp.eq.s32.totalorder %s21, 0
      %p105 = por %p103, %p104
      %p106 = scmp.ne.s32.totalorder %s94, %s95
      %p107 = scmp.eq.s32.totalorder %s22, 1
      %p108 = por %p106, %p107
      %p110 = scmp.ne.s32.totalorder %s95, %s109
      %p111 = scmp.eq.s32.totalorder %s22, 0
      %p112 = por %p110, %p111
      %s114 = sadd.s32 %s113, 1
      %p117 = scmp.eq.s32.totalorder %s16, 1
      %p118 = scmp.ne.s32.totalorder %s113, %s115
      %p119 = scmp.eq.s32.totalorder %s16, 0
      %p120 = por %p118, %p119
      %p121 = scmp.ne.s32.totalorder %s113, %s115
      %p122 = scmp.eq.s32.totalorder %s21, 1
      %p123 = por %p121, %p122
      %p124 = scmp.ne.s32.totalorder %s115, %s116
      %p125 = scmp.eq.s32.totalorder %s21, 0
      %p126 = por %p124, %p125
      %p127 = scmp.ne.s32.totalorder %s115, %s116
      %p128 = scmp.eq.s32.totalorder %s22, 1
      %p129 = por %p127, %p128
      %p131 = scmp.ne.s32.totalorder %s116, %s130
      %p132 = scmp.eq.s32.totalorder %s22, 0
      %p133 = por %p131, %p132
      %s134 = ssub.s32 %s16, %s23
      %p135 = scmp.eq.s32.totalorder %s134, 0
      %s137 = sadd.s32 %s136, 1
      %s138 = scalar_select %p135, %s136, %s137
      %p141 = pneg %p135
      %p142 = scmp.eq.s32.totalorder %s16, 1
      %p143 = por %p141, %p142
      %p144 = scmp.ne.s32.totalorder %s136, %s139
      %p145 = scmp.eq.s32.totalorder %s16, 0
      %p146 = por %p144, %p145
      %p147 = scmp.ne.s32.totalorder %s136, %s139
      %p148 = scmp.eq.s32.totalorder %s21, 1
      %p149 = por %p147, %p148
      %p150 = scmp.ne.s32.totalorder %s139, %s140
      %p151 = scmp.eq.s32.totalorder %s21, 0
      %p152 = por %p150, %p151
      %p153 = scmp.ne.s32.totalorder %s139, %s140
      %p154 = scmp.eq.s32.totalorder %s22, 1
      %p155 = por %p153, %p154
      %p157 = scmp.ne.s32.totalorder %s140, %s156
      %p158 = scmp.eq.s32.totalorder %s22, 0
      %p159 = por %p157, %p158
      %p160 = scmp.le.s32.totalorder 1, %s16
      %p161 = scmp.lt.s32.totalorder %s16, 3
      %p162 = pnand %p160, %p161
      %p163 = pneg %p162
      // Predicated region
      $region9: #{tpu_custom_call.1} parent=5 // pred_check
        _
      $region10: #{tpu_custom_call.1} parent=5 // pred_check_branch
        %165 = sbr.rel (%p162) target = $region12
      $region11: #{tpu_custom_call.1} parent=5 // pred_region
        %s166 = ssub.s32 %s16, 1
        // Predicated region
        $region13: #{tpu_custom_call.1} parent=11 // pred_check
          %p167 = pneg %p63
        $region14: #{tpu_custom_call.1} parent=11 // pred_check_branch
          %169 = sbr.rel (%p167) target = $region16
        $region15: #{tpu_custom_call.1} parent=11 // pred_region
          %s171 = ssub.s32 18432, 18432
          %172 = vsyncadd [#allocation4], %s171
          %s173 = sshll.u32 [#allocation3], 4
          %s174 = int_to_ptr.vmem [resolvable:$true] %s173
          %179 = dma.hbm_to_vmem [thread:$0]  %s1, 18432, %s174, [#allocation4], 128, 128, 8
        $region16: #{tpu_custom_call.1} parent=11 // pred_fallthru
          _
        // Predicated region
        $region17: #{tpu_custom_call.1} parent=11 // pred_check
          %p180 = pneg %p84
        $region18: #{tpu_custom_call.1} parent=11 // pred_check_branch
          %182 = sbr.rel (%p180) target = $region20
        $region19: #{tpu_custom_call.1} parent=11 // pred_region
          _
        $region20: #{tpu_custom_call.1} parent=11 // pred_fallthru
          _
        // Predicated region
        $region21: #{tpu_custom_call.1} parent=11 // pred_check
          %p183 = pneg %p105
        $region22: #{tpu_custom_call.1} parent=11 // pred_check_branch
          %185 = sbr.rel (%p183) target = $region24
        $region23: #{tpu_custom_call.1} parent=11 // pred_region
          %s187 = ssub.s32 18432, 18432
          %188 = vsyncadd [#allocation7], %s187
          %s189 = sshll.u32 [#allocation6], 4
          %s190 = int_to_ptr.vmem [resolvable:$true] %s189
          %195 = dma.hbm_to_vmem [thread:$0]  %s3, 18432, %s190, [#allocation7], 128, 128, 8
        $region24: #{tpu_custom_call.1} parent=11 // pred_fallthru
          _
        // Predicated region
        $region25: #{tpu_custom_call.1} parent=11 // pred_check
          %p196 = pneg %p126
        $region26: #{tpu_custom_call.1} parent=11 // pred_check_branch
          %198 = sbr.rel (%p196) target = $region28
        $region27: #{tpu_custom_call.1} parent=11 // pred_region
          _
        $region28: #{tpu_custom_call.1} parent=11 // pred_fallthru
          _
      $region12: #{tpu_custom_call.1} parent=5 // pred_fallthru
        _
      %p199 = scmp.lt.s32.totalorder %s16, 2
      // Predicated region
      $region29: #{tpu_custom_call.1} parent=5 // pred_check
        %p200 = pneg %p199
      $region30: #{tpu_custom_call.1} parent=5 // pred_check_branch
        %202 = sbr.rel (%p200) target = $region32
      $region31: #{tpu_custom_call.1} parent=5 // pred_region
        // Predicated region
        $region33: #{tpu_custom_call.1} parent=31 // pred_check
          %p203 = pneg %p36
        $region34: #{tpu_custom_call.1} parent=31 // pred_check_branch
          %205 = sbr.rel (%p203) target = $region36
        $region35: #{tpu_custom_call.1} parent=31 // pred_region
          %p206 = scmp.lt.s32.totalorder %s16, 1
          %s207 = scalar_select %p206, %s16, 1
          %s208 = smul.addr %s207, 9
          %s209 = smul.addr %s208, 8
          %s210 = scalar_lea.vmem %s0, %s209
        $region36: #{tpu_custom_call.1} parent=31 // pred_fallthru
          _
      $region32: #{tpu_custom_call.1} parent=5 // pred_fallthru
        _
      %p211 = scmp.le.s32.totalorder 1, %s16
      %p212 = scmp.lt.s32.totalorder %s16, 3
      %p213 = pnand %p211, %p212
      %p214 = pneg %p213
      // Predicated region
      $region37: #{tpu_custom_call.1} parent=5 // pred_check
        _
      $region38: #{tpu_custom_call.1} parent=5 // pred_check_branch
        %216 = sbr.rel (%p213) target = $region40
      $region39: #{tpu_custom_call.1} parent=5 // pred_region
        %s217 = ssub.s32 %s16, 1
        // Predicated region
        $region41: #{tpu_custom_call.1} parent=39 // pred_check
          %p218 = pneg %p63
        $region42: #{tpu_custom_call.1} parent=39 // pred_check_branch
          %220 = sbr.rel (%p218) target = $region44
        $region43: #{tpu_custom_call.1} parent=39 // pred_region
          %221 = dma.done [#allocation4], 18432
        $region44: #{tpu_custom_call.1} parent=39 // pred_fallthru
          _
        // Predicated region
        $region45: #{tpu_custom_call.1} parent=39 // pred_check
          %p222 = pneg %p105
        $region46: #{tpu_custom_call.1} parent=39 // pred_check_branch
          %224 = sbr.rel (%p222) target = $region48
        $region47: #{tpu_custom_call.1} parent=39 // pred_region
          %225 = dma.done [#allocation7], 18432
        $region48: #{tpu_custom_call.1} parent=39 // pred_fallthru
          _
        %p226 = scmp.lt.s32.totalorder %s21, 1
        %s227 = scalar_select %p226, %s21, 1
        %s228 = smul.addr %s227, 9
        %s229 = smul.addr %s228, 8
        %s230 = scalar_lea.vmem %s0, %s229
        %p231 = pneg %p42
        %p232 = pneg %p39
        %p233 = pneg %p63
        %p234 = pneg %p60
        %p235 = pneg %p84
        %p236 = pneg %p81
        %p237 = pneg %p105
        %p238 = pneg %p102
        %p239 = pneg %p126
        %p240 = pneg %p123
        %p241 = pneg %p152
        %p242 = pneg %p149
        %s243 = sand.u32 %s139, 1
        %s244 = scalar_lea.sflag [#allocation5], %s243
        %s245 = sand.u32 %s139, 1
        %s246 = smul.addr %s245, 32
        %s247 = scalar_lea.vmem [#allocation8], %s246
        %p248 = scmp.lt.s32.totalorder %s21, 1
        %s249 = scalar_select %p248, %s21, 1
        %s250 = smul.addr %s249, 9
        %s251 = smul.addr %s250, 8
        %s252 = scalar_lea.vmem %s0, %s251
        %v254 = vld [vmem:[%s252] sm:$0xff]
        %v255 = vld [vmem:[%s252 + $0x8] sm:$0xff]
        %v256 = vld [vmem:[%s252 + $0x10] sm:$0xff]
        %v257 = vld [vmem:[%s252 + $0x18] sm:$0xff]
        %v258 = vld [vmem:[%s252 + $0x20] sm:$0xff]
        %v259 = vld [vmem:[%s252 + $0x28] sm:$0xff]
        %v260 = vld [vmem:[%s252 + $0x30] sm:$0x3]
        %v261 = vld [vmem:[%s252 + $0x38] sm:$0x3]
        %v262 = vld [vmem:[%s252 + $0x40] sm:$0x3]
        %v263 = vpack.c.bf16 %v257, %v254
        %v264 = vpack.c.bf16 %v258, %v255
        %v265 = vpack.c.bf16 %v259, %v256
        %v266 = vpack.c.bf16 %v260, %v260
        %v267 = vpack.c.bf16 %v261, %v261
        %v268 = vpack.c.bf16 %v262, %v262
        %vm269 = vsmask.f32 7424
        %v271 = vshrl.u32 %v263, 16
        %v273 = vshll.u32 %v263, 16
        %v275 = vrot.slane %v273, 1
        %v276 = vor.u32 %v271, %v275
        %v278 = vshll.u32 %v266, 16
        %v280 = vrot.slane %v278, 1
        %v281 = vsel %vm269, %v276, %v280
        %v283 = vshrl.u32 %v264, 16
        %v285 = vshll.u32 %v264, 16
        %v287 = vrot.slane %v285, 1
        %v288 = vor.u32 %v283, %v287
        %v290 = vshll.u32 %v267, 16
        %v292 = vrot.slane %v290, 1
        %v293 = vsel %vm269, %v288, %v292
        %v295 = vshrl.u32 %v265, 16
        %v297 = vshll.u32 %v265, 16
        %v299 = vrot.slane %v297, 1
        %v300 = vor.u32 %v295, %v299
        %v302 = vshll.u32 %v268, 16
        %v304 = vrot.slane %v302, 1
        %v305 = vsel %vm269, %v300, %v304
        %vm315 = vcmask 1046528
        %v316 = vrot.slane %v263, 1
        %v317 = vrot.slane %v266, 1
        %v318 = vsel %vm315, %v316, %v317
        %v319 = vrot.slane %v264, 1
        %v320 = vrot.slane %v267, 1
        %v321 = vsel %vm315, %v319, %v320
        %v322 = vrot.slane %v265, 1
        %v323 = vrot.slane %v268, 1
        %v324 = vsel %vm315, %v322, %v323
        %v328 = vld [vmem:[#allocation3] sm:$0xff]
        %v329 = vld [vmem:[#allocation3 + $0x8] sm:$0xff]
        %v330 = vld [vmem:[#allocation3 + $0x10] sm:$0xff]
        %v331 = vld [vmem:[#allocation3 + $0x18] sm:$0xff]
        %v332 = vld [vmem:[#allocation3 + $0x20] sm:$0xff]
        %v333 = vld [vmem:[#allocation3 + $0x28] sm:$0xff]
        %v334 = vld [vmem:[#allocation3 + $0x30] sm:$0xff]
        %v335 = vld [vmem:[#allocation3 + $0x38] sm:$0xff]
        %v336 = vld [vmem:[#allocation3 + $0x40] sm:$0xff]
        %v337 = vld [vmem:[#allocation3 + $0x48] sm:$0xff]
        %v338 = vld [vmem:[#allocation3 + $0x50] sm:$0xff]
        %v339 = vld [vmem:[#allocation3 + $0x58] sm:$0xff]
        %v340 = vld [vmem:[#allocation3 + $0x60] sm:$0xff]
        %v341 = vld [vmem:[#allocation3 + $0x68] sm:$0xff]
        %v342 = vld [vmem:[#allocation3 + $0x70] sm:$0xff]
        %v343 = vld [vmem:[#allocation3 + $0x78] sm:$0xff]
        %v344 = vld [vmem:[#allocation3 + $0x80] sm:$0xff]
        %v345 = vld [vmem:[#allocation3 + $0x88] sm:$0xff]
        %v346 = vld [vmem:[#allocation3 + $0x90] sm:$0xff]
        %v347 = vld [vmem:[#allocation3 + $0x98] sm:$0xff]
        %v348 = vld [vmem:[#allocation3 + $0xa0] sm:$0xff]
        %v349 = vld [vmem:[#allocation3 + $0xa8] sm:$0xff]
        %v350 = vld [vmem:[#allocation3 + $0xb0] sm:$0xff]
        %v351 = vld [vmem:[#allocation3 + $0xb8] sm:$0xff]
        %v352 = vld [vmem:[#allocation3 + $0xc0] sm:$0xff]
        %v353 = vld [vmem:[#allocation3 + $0xc8] sm:$0xff]
        %v354 = vld [vmem:[#allocation3 + $0xd0] sm:$0xff]
        %v355 = vld [vmem:[#allocation3 + $0xd8] sm:$0xff]
        %v356 = vld [vmem:[#allocation3 + $0xe0] sm:$0xff]
        %v357 = vld [vmem:[#allocation3 + $0xe8] sm:$0xff]
        %v358 = vld [vmem:[#allocation3 + $0xf0] sm:$0xff]
        %v359 = vld [vmem:[#allocation3 + $0xf8] sm:$0xff]
        %v360 = vld [vmem:[#allocation3 + $0x100] sm:$0xff]
        %v361 = vld [vmem:[#allocation3 + $0x108] sm:$0xff]
        %v362 = vld [vmem:[#allocation3 + $0x110] sm:$0xff]
        %v363 = vld [vmem:[#allocation3 + $0x118] sm:$0xff]
        %v364 = vld [vmem:[#allocation3 + $0x120] sm:$0xff]
        %v365 = vld [vmem:[#allocation3 + $0x128] sm:$0xff]
        %v366 = vld [vmem:[#allocation3 + $0x130] sm:$0xff]
        %v367 = vld [vmem:[#allocation3 + $0x138] sm:$0xff]
        %v368 = vld [vmem:[#allocation3 + $0x140] sm:$0xff]
        %v369 = vld [vmem:[#allocation3 + $0x148] sm:$0xff]
        %v370 = vld [vmem:[#allocation3 + $0x150] sm:$0xff]
        %v371 = vld [vmem:[#allocation3 + $0x158] sm:$0xff]
        %v372 = vld [vmem:[#allocation3 + $0x160] sm:$0xff]
        %v373 = vld [vmem:[#allocation3 + $0x168] sm:$0xff]
        %v374 = vld [vmem:[#allocation3 + $0x170] sm:$0xff]
        %v375 = vld [vmem:[#allocation3 + $0x178] sm:$0xff]
        %v376 = vld [vmem:[#allocation3 + $0x180] sm:$0xff]
        %v377 = vld [vmem:[#allocation3 + $0x188] sm:$0xff]
        %v378 = vld [vmem:[#allocation3 + $0x190] sm:$0xff]
        %v379 = vld [vmem:[#allocation3 + $0x198] sm:$0xff]
        %v380 = vld [vmem:[#allocation3 + $0x1a0] sm:$0xff]
        %v381 = vld [vmem:[#allocation3 + $0x1a8] sm:$0xff]
        %v382 = vld [vmem:[#allocation3 + $0x1b0] sm:$0xff]
        %v383 = vld [vmem:[#allocation3 + $0x1b8] sm:$0xff]
        %v384 = vld [vmem:[#allocation3 + $0x1c0] sm:$0xff]
        %v385 = vld [vmem:[#allocation3 + $0x1c8] sm:$0xff]
        %v386 = vld [vmem:[#allocation3 + $0x1d0] sm:$0xff]
        %v387 = vld [vmem:[#allocation3 + $0x1d8] sm:$0xff]
        %v388 = vld [vmem:[#allocation3 + $0x1e0] sm:$0xff]
        %v389 = vld [vmem:[#allocation3 + $0x1e8] sm:$0xff]
        %v390 = vld [vmem:[#allocation3 + $0x1f0] sm:$0xff]
        %v391 = vld [vmem:[#allocation3 + $0x1f8] sm:$0xff]
        %v392 = vld [vmem:[#allocation3 + $0x200] sm:$0xff]
        %v393 = vld [vmem:[#allocation3 + $0x208] sm:$0xff]
        %v394 = vld [vmem:[#allocation3 + $0x210] sm:$0xff]
        %v395 = vld [vmem:[#allocation3 + $0x218] sm:$0xff]
        %v396 = vld [vmem:[#allocation3 + $0x220] sm:$0xff]
        %v397 = vld [vmem:[#allocation3 + $0x228] sm:$0xff]
        %v398 = vld [vmem:[#allocation3 + $0x230] sm:$0xff]
        %v399 = vld [vmem:[#allocation3 + $0x238] sm:$0xff]
        %v400 = vld [vmem:[#allocation3 + $0x240] sm:$0xff]
        %v401 = vld [vmem:[#allocation3 + $0x248] sm:$0xff]
        %v402 = vld [vmem:[#allocation3 + $0x250] sm:$0xff]
        %v403 = vld [vmem:[#allocation3 + $0x258] sm:$0xff]
        %v404 = vld [vmem:[#allocation3 + $0x260] sm:$0xff]
        %v405 = vld [vmem:[#allocation3 + $0x268] sm:$0xff]
        %v406 = vld [vmem:[#allocation3 + $0x270] sm:$0xff]
        %v407 = vld [vmem:[#allocation3 + $0x278] sm:$0xff]
        %v408 = vld [vmem:[#allocation3 + $0x280] sm:$0xff]
        %v409 = vld [vmem:[#allocation3 + $0x288] sm:$0xff]
        %v410 = vld [vmem:[#allocation3 + $0x290] sm:$0xff]
        %v411 = vld [vmem:[#allocation3 + $0x298] sm:$0xff]
        %v412 = vld [vmem:[#allocation3 + $0x2a0] sm:$0xff]
        %v413 = vld [vmem:[#allocation3 + $0x2a8] sm:$0xff]
        %v414 = vld [vmem:[#allocation3 + $0x2b0] sm:$0xff]
        %v415 = vld [vmem:[#allocation3 + $0x2b8] sm:$0xff]
        %v416 = vld [vmem:[#allocation3 + $0x2c0] sm:$0xff]
        %v417 = vld [vmem:[#allocation3 + $0x2c8] sm:$0xff]
        %v418 = vld [vmem:[#allocation3 + $0x2d0] sm:$0xff]
        %v419 = vld [vmem:[#allocation3 + $0x2d8] sm:$0xff]
        %v420 = vld [vmem:[#allocation3 + $0x2e0] sm:$0xff]
        %v421 = vld [vmem:[#allocation3 + $0x2e8] sm:$0xff]
        %v422 = vld [vmem:[#allocation3 + $0x2f0] sm:$0xff]
        %v423 = vld [vmem:[#allocation3 + $0x2f8] sm:$0xff]
        %v424 = vld [vmem:[#allocation3 + $0x300] sm:$0xff]
        %v425 = vld [vmem:[#allocation3 + $0x308] sm:$0xff]
        %v426 = vld [vmem:[#allocation3 + $0x310] sm:$0xff]
        %v427 = vld [vmem:[#allocation3 + $0x318] sm:$0xff]
        %v428 = vld [vmem:[#allocation3 + $0x320] sm:$0xff]
        %v429 = vld [vmem:[#allocation3 + $0x328] sm:$0xff]
        %v430 = vld [vmem:[#allocation3 + $0x330] sm:$0xff]
        %v431 = vld [vmem:[#allocation3 + $0x338] sm:$0xff]
        %v432 = vld [vmem:[#allocation3 + $0x340] sm:$0xff]
        %v433 = vld [vmem:[#allocation3 + $0x348] sm:$0xff]
        %v434 = vld [vmem:[#allocation3 + $0x350] sm:$0xff]
        %v435 = vld [vmem:[#allocation3 + $0x358] sm:$0xff]
        %v436 = vld [vmem:[#allocation3 + $0x360] sm:$0xff]
        %v437 = vld [vmem:[#allocation3 + $0x368] sm:$0xff]
        %v438 = vld [vmem:[#allocation3 + $0x370] sm:$0xff]
        %v439 = vld [vmem:[#allocation3 + $0x378] sm:$0xff]
        %v440 = vld [vmem:[#allocation3 + $0x380] sm:$0xff]
        %v441 = vld [vmem:[#allocation3 + $0x388] sm:$0xff]
        %v442 = vld [vmem:[#allocation3 + $0x390] sm:$0xff]
        %v443 = vld [vmem:[#allocation3 + $0x398] sm:$0xff]
        %v444 = vld [vmem:[#allocation3 + $0x3a0] sm:$0xff]
        %v445 = vld [vmem:[#allocation3 + $0x3a8] sm:$0xff]
        %v446 = vld [vmem:[#allocation3 + $0x3b0] sm:$0xff]
        %v447 = vld [vmem:[#allocation3 + $0x3b8] sm:$0xff]
        %v448 = vld [vmem:[#allocation3 + $0x3c0] sm:$0xff]
        %v449 = vld [vmem:[#allocation3 + $0x3c8] sm:$0xff]
        %v450 = vld [vmem:[#allocation3 + $0x3d0] sm:$0xff]
        %v451 = vld [vmem:[#allocation3 + $0x3d8] sm:$0xff]
        %v452 = vld [vmem:[#allocation3 + $0x3e0] sm:$0xff]
        %v453 = vld [vmem:[#allocation3 + $0x3e8] sm:$0xff]
        %v454 = vld [vmem:[#allocation3 + $0x3f0] sm:$0xff]
        %v455 = vld [vmem:[#allocation3 + $0x3f8] sm:$0xff]
        %v456 = vld [vmem:[#allocation3 + $0x400] sm:$0xff]
        %v457 = vld [vmem:[#allocation3 + $0x408] sm:$0xff]
        %v458 = vld [vmem:[#allocation3 + $0x410] sm:$0xff]
        %v459 = vld [vmem:[#allocation3 + $0x418] sm:$0xff]
        %v460 = vld [vmem:[#allocation3 + $0x420] sm:$0xff]
        %v461 = vld [vmem:[#allocation3 + $0x428] sm:$0xff]
        %v462 = vld [vmem:[#allocation3 + $0x430] sm:$0xff]
        %v463 = vld [vmem:[#allocation3 + $0x438] sm:$0xff]
        %v464 = vld [vmem:[#allocation3 + $0x440] sm:$0xff]
        %v465 = vld [vmem:[#allocation3 + $0x448] sm:$0xff]
        %v466 = vld [vmem:[#allocation3 + $0x450] sm:$0xff]
        %v467 = vld [vmem:[#allocation3 + $0x458] sm:$0xff]
        %v468 = vld [vmem:[#allocation3 + $0x460] sm:$0xff]
        %v469 = vld [vmem:[#allocation3 + $0x468] sm:$0xff]
        %v470 = vld [vmem:[#allocation3 + $0x470] sm:$0xff]
        %v471 = vld [vmem:[#allocation3 + $0x478] sm:$0xff]
        %v472 = vld [vmem:[%s2] sm:$0x3]
        %v474 = vlaneseq
        %v475 = vshrl.u32 %v474, 7
        %v476 = vsub.s32 0, %v475
        %v477 = vrot.slane %v472, %v476
        %v478 = vlaneseq
        %v479 = vshrl.u32 %v478, 7
        %v480 = vsub.s32 1, %v479
        %v481 = vrot.slane %v472, %v480
        %v628 = vunpack.c.l.b16 %v328
        %v629 = vunpack.c.h.b16 %v328
        %v630 = vunpack.c.l.b16 %v329
        %v631 = vunpack.c.h.b16 %v329
        %v632 = vunpack.c.l.b16 %v330
        %v633 = vunpack.c.h.b16 %v330
        %v634 = vunpack.c.l.b16 %v331
        %v635 = vunpack.c.h.b16 %v331
        %v636 = vunpack.c.l.b16 %v332
        %v637 = vunpack.c.h.b16 %v332
        %v638 = vunpack.c.l.b16 %v333
        %v639 = vunpack.c.h.b16 %v333
        %v640 = vunpack.c.l.b16 %v334
        %v641 = vunpack.c.h.b16 %v334
        %v642 = vunpack.c.l.b16 %v335
        %v643 = vunpack.c.h.b16 %v335
        %v644 = vunpack.c.l.b16 %v336
        %v645 = vunpack.c.h.b16 %v336
        %v646 = vunpack.c.l.b16 %v337
        %v647 = vunpack.c.h.b16 %v337
        %v648 = vunpack.c.l.b16 %v338
        %v649 = vunpack.c.h.b16 %v338
        %v650 = vunpack.c.l.b16 %v339
        %v651 = vunpack.c.h.b16 %v339
        %v652 = vunpack.c.l.b16 %v340
        %v653 = vunpack.c.h.b16 %v340
        %v654 = vunpack.c.l.b16 %v341
        %v655 = vunpack.c.h.b16 %v341
        %v656 = vunpack.c.l.b16 %v342
        %v657 = vunpack.c.h.b16 %v342
        %v658 = vunpack.c.l.b16 %v343
        %v659 = vunpack.c.h.b16 %v343
        %v660 = vunpack.c.l.b16 %v344
        %v661 = vunpack.c.h.b16 %v344
        %v662 = vunpack.c.l.b16 %v345
        %v663 = vunpack.c.h.b16 %v345
        %v664 = vunpack.c.l.b16 %v346
        %v665 = vunpack.c.h.b16 %v346
        %v666 = vunpack.c.l.b16 %v347
        %v667 = vunpack.c.h.b16 %v347
        %v668 = vunpack.c.l.b16 %v348
        %v669 = vunpack.c.h.b16 %v348
        %v670 = vunpack.c.l.b16 %v349
        %v671 = vunpack.c.h.b16 %v349
        %v672 = vunpack.c.l.b16 %v350
        %v673 = vunpack.c.h.b16 %v350
        %v674 = vunpack.c.l.b16 %v351
        %v675 = vunpack.c.h.b16 %v351
        %v676 = vunpack.c.l.b16 %v352
        %v677 = vunpack.c.h.b16 %v352
        %v678 = vunpack.c.l.b16 %v353
        %v679 = vunpack.c.h.b16 %v353
        %v680 = vunpack.c.l.b16 %v354
        %v681 = vunpack.c.h.b16 %v354
        %v682 = vunpack.c.l.b16 %v355
        %v683 = vunpack.c.h.b16 %v355
        %v684 = vunpack.c.l.b16 %v356
        %v685 = vunpack.c.h.b16 %v356
        %v686 = vunpack.c.l.b16 %v357
        %v687 = vunpack.c.h.b16 %v357
        %v688 = vunpack.c.l.b16 %v358
        %v689 = vunpack.c.h.b16 %v358
        %v690 = vunpack.c.l.b16 %v359
        %v691 = vunpack.c.h.b16 %v359
        %v692 = vunpack.c.l.b16 %v360
        %v693 = vunpack.c.h.b16 %v360
        %v694 = vunpack.c.l.b16 %v361
        %v695 = vunpack.c.h.b16 %v361
        %v696 = vunpack.c.l.b16 %v362
        %v697 = vunpack.c.h.b16 %v362
        %v698 = vunpack.c.l.b16 %v363
        %v699 = vunpack.c.h.b16 %v363
        %v700 = vunpack.c.l.b16 %v364
        %v701 = vunpack.c.h.b16 %v364
        %v702 = vunpack.c.l.b16 %v365
        %v703 = vunpack.c.h.b16 %v365
        %v704 = vunpack.c.l.b16 %v366
        %v705 = vunpack.c.h.b16 %v366
        %v706 = vunpack.c.l.b16 %v367
        %v707 = vunpack.c.h.b16 %v367
        %v708 = vunpack.c.l.b16 %v368
        %v709 = vunpack.c.h.b16 %v368
        %v710 = vunpack.c.l.b16 %v369
        %v711 = vunpack.c.h.b16 %v369
        %v712 = vunpack.c.l.b16 %v370
        %v713 = vunpack.c.h.b16 %v370
        %v714 = vunpack.c.l.b16 %v371
        %v715 = vunpack.c.h.b16 %v371
        %v716 = vunpack.c.l.b16 %v372
        %v717 = vunpack.c.h.b16 %v372
        %v718 = vunpack.c.l.b16 %v373
        %v719 = vunpack.c.h.b16 %v373
        %v720 = vunpack.c.l.b16 %v374
        %v721 = vunpack.c.h.b16 %v374
        %v722 = vunpack.c.l.b16 %v375
        %v723 = vunpack.c.h.b16 %v375
        %v724 = vunpack.c.l.b16 %v376
        %v725 = vunpack.c.h.b16 %v376
        %v726 = vunpack.c.l.b16 %v377
        %v727 = vunpack.c.h.b16 %v377
        %v728 = vunpack.c.l.b16 %v378
        %v729 = vunpack.c.h.b16 %v378
        %v730 = vunpack.c.l.b16 %v379
        %v731 = vunpack.c.h.b16 %v379
        %v732 = vunpack.c.l.b16 %v380
        %v733 = vunpack.c.h.b16 %v380
        %v734 = vunpack.c.l.b16 %v381
        %v735 = vunpack.c.h.b16 %v381
        %v736 = vunpack.c.l.b16 %v382
        %v737 = vunpack.c.h.b16 %v382
        %v738 = vunpack.c.l.b16 %v383
        %v739 = vunpack.c.h.b16 %v383
        %v740 = vunpack.c.l.b16 %v384
        %v741 = vunpack.c.h.b16 %v384
        %v742 = vunpack.c.l.b16 %v385
        %v743 = vunpack.c.h.b16 %v385
        %v744 = vunpack.c.l.b16 %v386
        %v745 = vunpack.c.h.b16 %v386
        %v746 = vunpack.c.l.b16 %v387
        %v747 = vunpack.c.h.b16 %v387
        %v748 = vunpack.c.l.b16 %v388
        %v749 = vunpack.c.h.b16 %v388
        %v750 = vunpack.c.l.b16 %v389
        %v751 = vunpack.c.h.b16 %v389
        %v752 = vunpack.c.l.b16 %v390
        %v753 = vunpack.c.h.b16 %v390
        %v754 = vunpack.c.l.b16 %v391
        %v755 = vunpack.c.h.b16 %v391
        %v756 = vunpack.c.l.b16 %v392
        %v757 = vunpack.c.h.b16 %v392
        %v758 = vunpack.c.l.b16 %v393
        %v759 = vunpack.c.h.b16 %v393
        %v760 = vunpack.c.l.b16 %v394
        %v761 = vunpack.c.h.b16 %v394
        %v762 = vunpack.c.l.b16 %v395
        %v763 = vunpack.c.h.b16 %v395
        %v764 = vunpack.c.l.b16 %v396
        %v765 = vunpack.c.h.b16 %v396
        %v766 = vunpack.c.l.b16 %v397
        %v767 = vunpack.c.h.b16 %v397
        %v768 = vunpack.c.l.b16 %v398
        %v769 = vunpack.c.h.b16 %v398
        %v770 = vunpack.c.l.b16 %v399
        %v771 = vunpack.c.h.b16 %v399
        %v772 = vunpack.c.l.b16 %v400
        %v773 = vunpack.c.h.b16 %v400
        %v774 = vunpack.c.l.b16 %v401
        %v775 = vunpack.c.h.b16 %v401
        %v776 = vunpack.c.l.b16 %v402
        %v777 = vunpack.c.h.b16 %v402
        %v778 = vunpack.c.l.b16 %v403
        %v779 = vunpack.c.h.b16 %v403
        %v780 = vunpack.c.l.b16 %v404
        %v781 = vunpack.c.h.b16 %v404
        %v782 = vunpack.c.l.b16 %v405
        %v783 = vunpack.c.h.b16 %v405
        %v784 = vunpack.c.l.b16 %v406
        %v785 = vunpack.c.h.b16 %v406
        %v786 = vunpack.c.l.b16 %v407
        %v787 = vunpack.c.h.b16 %v407
        %v788 = vunpack.c.l.b16 %v408
        %v789 = vunpack.c.h.b16 %v408
        %v790 = vunpack.c.l.b16 %v409
        %v791 = vunpack.c.h.b16 %v409
        %v792 = vunpack.c.l.b16 %v410
        %v793 = vunpack.c.h.b16 %v410
        %v794 = vunpack.c.l.b16 %v411
        %v795 = vunpack.c.h.b16 %v411
        %v796 = vunpack.c.l.b16 %v412
        %v797 = vunpack.c.h.b16 %v412
        %v798 = vunpack.c.l.b16 %v413
        %v799 = vunpack.c.h.b16 %v413
        %v800 = vunpack.c.l.b16 %v414
        %v801 = vunpack.c.h.b16 %v414
        %v802 = vunpack.c.l.b16 %v415
        %v803 = vunpack.c.h.b16 %v415
        %v804 = vunpack.c.l.b16 %v416
        %v805 = vunpack.c.h.b16 %v416
        %v806 = vunpack.c.l.b16 %v417
        %v807 = vunpack.c.h.b16 %v417
        %v808 = vunpack.c.l.b16 %v418
        %v809 = vunpack.c.h.b16 %v418
        %v810 = vunpack.c.l.b16 %v419
        %v811 = vunpack.c.h.b16 %v419
        %v812 = vunpack.c.l.b16 %v420
        %v813 = vunpack.c.h.b16 %v420
        %v814 = vunpack.c.l.b16 %v421
        %v815 = vunpack.c.h.b16 %v421
        %v816 = vunpack.c.l.b16 %v422
        %v817 = vunpack.c.h.b16 %v422
        %v818 = vunpack.c.l.b16 %v423
        %v819 = vunpack.c.h.b16 %v423
        %v820 = vunpack.c.l.b16 %v424
        %v821 = vunpack.c.h.b16 %v424
        %v822 = vunpack.c.l.b16 %v425
        %v823 = vunpack.c.h.b16 %v425
        %v824 = vunpack.c.l.b16 %v426
        %v825 = vunpack.c.h.b16 %v426
        %v826 = vunpack.c.l.b16 %v427
        %v827 = vunpack.c.h.b16 %v427
        %v828 = vunpack.c.l.b16 %v428
        %v829 = vunpack.c.h.b16 %v428
        %v830 = vunpack.c.l.b16 %v429
        %v831 = vunpack.c.h.b16 %v429
        %v832 = vunpack.c.l.b16 %v430
        %v833 = vunpack.c.h.b16 %v430
        %v834 = vunpack.c.l.b16 %v431
        %v835 = vunpack.c.h.b16 %v431
        %v836 = vunpack.c.l.b16 %v432
        %v837 = vunpack.c.h.b16 %v432
        %v838 = vunpack.c.l.b16 %v433
        %v839 = vunpack.c.h.b16 %v433
        %v840 = vunpack.c.l.b16 %v434
        %v841 = vunpack.c.h.b16 %v434
        %v842 = vunpack.c.l.b16 %v435
        %v843 = vunpack.c.h.b16 %v435
        %v844 = vunpack.c.l.b16 %v436
        %v845 = vunpack.c.h.b16 %v436
        %v846 = vunpack.c.l.b16 %v437
        %v847 = vunpack.c.h.b16 %v437
        %v848 = vunpack.c.l.b16 %v438
        %v849 = vunpack.c.h.b16 %v438
        %v850 = vunpack.c.l.b16 %v439
        %v851 = vunpack.c.h.b16 %v439
        %v852 = vunpack.c.l.b16 %v440
        %v853 = vunpack.c.h.b16 %v440
        %v854 = vunpack.c.l.b16 %v441
        %v855 = vunpack.c.h.b16 %v441
        %v856 = vunpack.c.l.b16 %v442
        %v857 = vunpack.c.h.b16 %v442
        %v858 = vunpack.c.l.b16 %v443
        %v859 = vunpack.c.h.b16 %v443
        %v860 = vunpack.c.l.b16 %v444
        %v861 = vunpack.c.h.b16 %v444
        %v862 = vunpack.c.l.b16 %v445
        %v863 = vunpack.c.h.b16 %v445
        %v864 = vunpack.c.l.b16 %v446
        %v865 = vunpack.c.h.b16 %v446
        %v866 = vunpack.c.l.b16 %v447
        %v867 = vunpack.c.h.b16 %v447
        %v868 = vunpack.c.l.b16 %v448
        %v869 = vunpack.c.h.b16 %v448
        %v870 = vunpack.c.l.b16 %v449
        %v871 = vunpack.c.h.b16 %v449
        %v872 = vunpack.c.l.b16 %v450
        %v873 = vunpack.c.h.b16 %v450
        %v874 = vunpack.c.l.b16 %v451
        %v875 = vunpack.c.h.b16 %v451
        %v876 = vunpack.c.l.b16 %v452
        %v877 = vunpack.c.h.b16 %v452
        %v878 = vunpack.c.l.b16 %v453
        %v879 = vunpack.c.h.b16 %v453
        %v880 = vunpack.c.l.b16 %v454
        %v881 = vunpack.c.h.b16 %v454
        %v882 = vunpack.c.l.b16 %v455
        %v883 = vunpack.c.h.b16 %v455
        %v884 = vunpack.c.l.b16 %v456
        %v885 = vunpack.c.h.b16 %v456
        %v886 = vunpack.c.l.b16 %v457
        %v887 = vunpack.c.h.b16 %v457
        %v888 = vunpack.c.l.b16 %v458
        %v889 = vunpack.c.h.b16 %v458
        %v890 = vunpack.c.l.b16 %v459
        %v891 = vunpack.c.h.b16 %v459
        %v892 = vunpack.c.l.b16 %v460
        %v893 = vunpack.c.h.b16 %v460
        %v894 = vunpack.c.l.b16 %v461
        %v895 = vunpack.c.h.b16 %v461
        %v896 = vunpack.c.l.b16 %v462
        %v897 = vunpack.c.h.b16 %v462
        %v898 = vunpack.c.l.b16 %v463
        %v899 = vunpack.c.h.b16 %v463
        %v900 = vunpack.c.l.b16 %v464
        %v901 = vunpack.c.h.b16 %v464
        %v902 = vunpack.c.l.b16 %v465
        %v903 = vunpack.c.h.b16 %v465
        %v904 = vunpack.c.l.b16 %v466
        %v905 = vunpack.c.h.b16 %v466
        %v906 = vunpack.c.l.b16 %v467
        %v907 = vunpack.c.h.b16 %v467
        %v908 = vunpack.c.l.b16 %v468
        %v909 = vunpack.c.h.b16 %v468
        %v910 = vunpack.c.l.b16 %v469
        %v911 = vunpack.c.h.b16 %v469
        %v912 = vunpack.c.l.b16 %v470
        %v913 = vunpack.c.h.b16 %v470
        %v914 = vunpack.c.l.b16 %v471
        %v915 = vunpack.c.h.b16 %v471
        %v916 = vpack.c.b16 %v630, %v628
        %v917 = vpack.c.b16 %v631, %v629
        %v918 = vpack.c.b16 %v634, %v632
        %v919 = vpack.c.b16 %v635, %v633
        %v920 = vpack.c.b16 %v638, %v636
        %v921 = vpack.c.b16 %v639, %v637
        %v922 = vpack.c.b16 %v642, %v640
        %v923 = vpack.c.b16 %v643, %v641
        %v924 = vpack.c.b16 %v646, %v644
        %v925 = vpack.c.b16 %v647, %v645
        %v926 = vpack.c.b16 %v650, %v648
        %v927 = vpack.c.b16 %v651, %v649
        %v928 = vpack.c.b16 %v654, %v652
        %v929 = vpack.c.b16 %v655, %v653
        %v930 = vpack.c.b16 %v658, %v656
        %v931 = vpack.c.b16 %v659, %v657
        %v932 = vpack.c.b16 %v662, %v660
        %v933 = vpack.c.b16 %v663, %v661
        %v934 = vpack.c.b16 %v666, %v664
        %v935 = vpack.c.b16 %v667, %v665
        %v936 = vpack.c.b16 %v670, %v668
        %v937 = vpack.c.b16 %v671, %v669
        %v938 = vpack.c.b16 %v674, %v672
        %v939 = vpack.c.b16 %v675, %v673
        %v940 = vpack.c.b16 %v678, %v676
        %v941 = vpack.c.b16 %v679, %v677
        %v942 = vpack.c.b16 %v682, %v680
        %v943 = vpack.c.b16 %v683, %v681
        %v944 = vpack.c.b16 %v686, %v684
        %v945 = vpack.c.b16 %v687, %v685
        %v946 = vpack.c.b16 %v690, %v688
        %v947 = vpack.c.b16 %v691, %v689
        %v948 = vpack.c.b16 %v694, %v692
        %v949 = vpack.c.b16 %v695, %v693
        %v950 = vpack.c.b16 %v698, %v696
        %v951 = vpack.c.b16 %v699, %v697
        %v952 = vpack.c.b16 %v702, %v700
        %v953 = vpack.c.b16 %v703, %v701
        %v954 = vpack.c.b16 %v706, %v704
        %v955 = vpack.c.b16 %v707, %v705
        %v956 = vpack.c.b16 %v710, %v708
        %v957 = vpack.c.b16 %v711, %v709
        %v958 = vpack.c.b16 %v714, %v712
        %v959 = vpack.c.b16 %v715, %v713
        %v960 = vpack.c.b16 %v718, %v716
        %v961 = vpack.c.b16 %v719, %v717
        %v962 = vpack.c.b16 %v722, %v720
        %v963 = vpack.c.b16 %v723, %v721
        %v964 = vpack.c.b16 %v726, %v724
        %v965 = vpack.c.b16 %v727, %v725
        %v966 = vpack.c.b16 %v730, %v728
        %v967 = vpack.c.b16 %v731, %v729
        %v968 = vpack.c.b16 %v734, %v732
        %v969 = vpack.c.b16 %v735, %v733
        %v970 = vpack.c.b16 %v738, %v736
        %v971 = vpack.c.b16 %v739, %v737
        %v972 = vpack.c.b16 %v742, %v740
        %v973 = vpack.c.b16 %v743, %v741
        %v974 = vpack.c.b16 %v746, %v744
        %v975 = vpack.c.b16 %v747, %v745
        %v976 = vpack.c.b16 %v750, %v748
        %v977 = vpack.c.b16 %v751, %v749
        %v978 = vpack.c.b16 %v754, %v752
        %v979 = vpack.c.b16 %v755, %v753
        %v980 = vpack.c.b16 %v758, %v756
        %v981 = vpack.c.b16 %v759, %v757
        %v982 = vpack.c.b16 %v762, %v760
        %v983 = vpack.c.b16 %v763, %v761
        %v984 = vpack.c.b16 %v766, %v764
        %v985 = vpack.c.b16 %v767, %v765
        %v986 = vpack.c.b16 %v770, %v768
        %v987 = vpack.c.b16 %v771, %v769
        %v988 = vpack.c.b16 %v774, %v772
        %v989 = vpack.c.b16 %v775, %v773
        %v990 = vpack.c.b16 %v778, %v776
        %v991 = vpack.c.b16 %v779, %v777
        %v992 = vpack.c.b16 %v782, %v780
        %v993 = vpack.c.b16 %v783, %v781
        %v994 = vpack.c.b16 %v786, %v784
        %v995 = vpack.c.b16 %v787, %v785
        %v996 = vpack.c.b16 %v790, %v788
        %v997 = vpack.c.b16 %v791, %v789
        %v998 = vpack.c.b16 %v794, %v792
        %v999 = vpack.c.b16 %v795, %v793
        %v1000 = vpack.c.b16 %v798, %v796
        %v1001 = vpack.c.b16 %v799, %v797
        %v1002 = vpack.c.b16 %v802, %v800
        %v1003 = vpack.c.b16 %v803, %v801
        %v1004 = vpack.c.b16 %v806, %v804
        %v1005 = vpack.c.b16 %v807, %v805
        %v1006 = vpack.c.b16 %v810, %v808
        %v1007 = vpack.c.b16 %v811, %v809
        %v1008 = vpack.c.b16 %v814, %v812
        %v1009 = vpack.c.b16 %v815, %v813
        %v1010 = vpack.c.b16 %v818, %v816
        %v1011 = vpack.c.b16 %v819, %v817
        %v1012 = vpack.c.b16 %v822, %v820
        %v1013 = vpack.c.b16 %v823, %v821
        %v1014 = vpack.c.b16 %v826, %v824
        %v1015 = vpack.c.b16 %v827, %v825
        %v1016 = vpack.c.b16 %v830, %v828
        %v1017 = vpack.c.b16 %v831, %v829
        %v1018 = vpack.c.b16 %v834, %v832
        %v1019 = vpack.c.b16 %v835, %v833
        %v1020 = vpack.c.b16 %v838, %v836
        %v1021 = vpack.c.b16 %v839, %v837
        %v1022 = vpack.c.b16 %v842, %v840
        %v1023 = vpack.c.b16 %v843, %v841
        %v1024 = vpack.c.b16 %v846, %v844
        %v1025 = vpack.c.b16 %v847, %v845
        %v1026 = vpack.c.b16 %v850, %v848
        %v1027 = vpack.c.b16 %v851, %v849
        %v1028 = vpack.c.b16 %v854, %v852
        %v1029 = vpack.c.b16 %v855, %v853
        %v1030 = vpack.c.b16 %v858, %v856
        %v1031 = vpack.c.b16 %v859, %v857
        %v1032 = vpack.c.b16 %v862, %v860
        %v1033 = vpack.c.b16 %v863, %v861
        %v1034 = vpack.c.b16 %v866, %v864
        %v1035 = vpack.c.b16 %v867, %v865
        %v1036 = vpack.c.b16 %v870, %v868
        %v1037 = vpack.c.b16 %v871, %v869
        %v1038 = vpack.c.b16 %v874, %v872
        %v1039 = vpack.c.b16 %v875, %v873
        %v1040 = vpack.c.b16 %v878, %v876
        %v1041 = vpack.c.b16 %v879, %v877
        %v1042 = vpack.c.b16 %v882, %v880
        %v1043 = vpack.c.b16 %v883, %v881
        %v1044 = vpack.c.b16 %v886, %v884
        %v1045 = vpack.c.b16 %v887, %v885
        %v1046 = vpack.c.b16 %v890, %v888
        %v1047 = vpack.c.b16 %v891, %v889
        %v1048 = vpack.c.b16 %v894, %v892
        %v1049 = vpack.c.b16 %v895, %v893
        %v1050 = vpack.c.b16 %v898, %v896
        %v1051 = vpack.c.b16 %v899, %v897
        %v1052 = vpack.c.b16 %v902, %v900
        %v1053 = vpack.c.b16 %v903, %v901
        %v1054 = vpack.c.b16 %v906, %v904
        %v1055 = vpack.c.b16 %v907, %v905
        %v1056 = vpack.c.b16 %v910, %v908
        %v1057 = vpack.c.b16 %v911, %v909
        %v1058 = vpack.c.b16 %v914, %v912
        %v1059 = vpack.c.b16 %v915, %v913
        %1204 = vmatprep.subr.bf16.mxu0 %v931
        %1205 = vmatpush1.bf16.msra.mxu0 %v930
        %1206 = vmatprep.subr.bf16.mxu0 %v929
        %1207 = vmatpush1.bf16.msra.mxu0 %v928
        %1208 = vmatprep.subr.bf16.mxu0 %v927
        %1209 = vmatpush1.bf16.msra.mxu0 %v926
        %1210 = vmatprep.subr.bf16.mxu0 %v925
        %1211 = vmatpush1.bf16.msra.mxu0 %v924
        %1212 = vmatprep.subr.bf16.mxu0 %v923
        %1213 = vmatpush1.bf16.msra.mxu0 %v922
        %1214 = vmatprep.subr.bf16.mxu0 %v921
        %1215 = vmatpush1.bf16.msra.mxu0 %v920
        %1216 = vmatprep.subr.bf16.mxu0 %v919
        %1217 = vmatpush1.bf16.msra.mxu0 %v918
        %1218 = vmatprep.subr.bf16.mxu0 %v917
        %1219 = vmatpush1.bf16.msra.mxu0 %v916
        %1220 = vmatprep.subr.bf16.mxu0 %v947
        %1221 = vmatpush2.bf16.msra.mxu0 %v946
        %1222 = vmatprep.subr.bf16.mxu0 %v945
        %1223 = vmatpush2.bf16.msra.mxu0 %v944
        %1224 = vmatprep.subr.bf16.mxu0 %v943
        %1225 = vmatpush2.bf16.msra.mxu0 %v942
        %1226 = vmatprep.subr.bf16.mxu0 %v941
        %1227 = vmatpush2.bf16.msra.mxu0 %v940
        %1228 = vmatprep.subr.bf16.mxu0 %v939
        %1229 = vmatpush2.bf16.msra.mxu0 %v938
        %1230 = vmatprep.subr.bf16.mxu0 %v937
        %1231 = vmatpush2.bf16.msra.mxu0 %v936
        %1232 = vmatprep.subr.bf16.mxu0 %v935
        %1233 = vmatpush2.bf16.msra.mxu0 %v934
        %1234 = vmatprep.subr.bf16.mxu0 %v933
        %1235 = vmatpush2.bf16.msra.mxu0 %v932
        %1236 = vmatprep.mubr.bf16.mxu0 %v264
        %1237 = vmatmul.mubr.bf16.gmra.mxu0 %v263
        %v1238 = vpop.f32.mrf.mxu0
        %v1239 = vadd.f32 %v477, %v1238
        %v1240 = vpop.f32.mrf.mxu0
        %v1241 = vadd.f32 %v481, %v1240
        %v1242 = vpop.f32.mrf.mxu0
        %v1243 = vadd.f32 %v477, %v1242
        %v1244 = vpop.f32.mrf.mxu0
        %v1245 = vadd.f32 %v481, %v1244
        %1246 = vdwg.mxu0
        %1247 = vmatprep.subr.bf16.mxu0 %v963
        %1248 = vmatpush1.bf16.msra.mxu0 %v962
        %1249 = vmatprep.subr.bf16.mxu0 %v961
        %1250 = vmatpush1.bf16.msra.mxu0 %v960
        %1251 = vmatprep.subr.bf16.mxu0 %v959
        %1252 = vmatpush1.bf16.msra.mxu0 %v958
        %1253 = vmatprep.subr.bf16.mxu0 %v957
        %1254 = vmatpush1.bf16.msra.mxu0 %v956
        %1255 = vmatprep.subr.bf16.mxu0 %v955
        %1256 = vmatpush1.bf16.msra.mxu0 %v954
        %1257 = vmatprep.subr.bf16.mxu0 %v953
        %1258 = vmatpush1.bf16.msra.mxu0 %v952
        %1259 = vmatprep.subr.bf16.mxu0 %v951
        %1260 = vmatpush1.bf16.msra.mxu0 %v950
        %1261 = vmatprep.subr.bf16.mxu0 %v949
        %1262 = vmatpush1.bf16.msra.mxu0 %v948
        %1263 = vmatprep.subr.bf16.mxu0 %v979
        %1264 = vmatpush2.bf16.msra.mxu0 %v978
        %1265 = vmatprep.subr.bf16.mxu0 %v977
        %1266 = vmatpush2.bf16.msra.mxu0 %v976
        %1267 = vmatprep.subr.bf16.mxu0 %v975
        %1268 = vmatpush2.bf16.msra.mxu0 %v974
        %1269 = vmatprep.subr.bf16.mxu0 %v973
        %1270 = vmatpush2.bf16.msra.mxu0 %v972
        %1271 = vmatprep.subr.bf16.mxu0 %v971
        %1272 = vmatpush2.bf16.msra.mxu0 %v970
        %1273 = vmatprep.subr.bf16.mxu0 %v969
        %1274 = vmatpush2.bf16.msra.mxu0 %v968
        %1275 = vmatprep.subr.bf16.mxu0 %v967
        %1276 = vmatpush2.bf16.msra.mxu0 %v966
        %1277 = vmatprep.subr.bf16.mxu0 %v965
        %1278 = vmatpush2.bf16.msra.mxu0 %v964
        %1279 = vmatprep.mubr.bf16.mxu0 %v281
        %1280 = vmatmul.mubr.bf16.gmra.mxu0 %v265
        %v1281 = vpop.f32.mrf.mxu0
        %v1282 = vadd.f32 %v1239, %v1281
        %v1283 = vpop.f32.mrf.mxu0
        %v1284 = vadd.f32 %v1241, %v1283
        %v1285 = vpop.f32.mrf.mxu0
        %v1286 = vadd.f32 %v1243, %v1285
        %v1287 = vpop.f32.mrf.mxu0
        %v1288 = vadd.f32 %v1245, %v1287
        %1289 = vdwg.mxu0
        %1290 = vmatprep.subr.bf16.mxu0 %v995
        %1291 = vmatpush1.bf16.msra.mxu0 %v994
        %1292 = vmatprep.subr.bf16.mxu0 %v993
        %1293 = vmatpush1.bf16.msra.mxu0 %v992
        %1294 = vmatprep.subr.bf16.mxu0 %v991
        %1295 = vmatpush1.bf16.msra.mxu0 %v990
        %1296 = vmatprep.subr.bf16.mxu0 %v989
        %1297 = vmatpush1.bf16.msra.mxu0 %v988
        %1298 = vmatprep.subr.bf16.mxu0 %v987
        %1299 = vmatpush1.bf16.msra.mxu0 %v986
        %1300 = vmatprep.subr.bf16.mxu0 %v985
        %1301 = vmatpush1.bf16.msra.mxu0 %v984
        %1302 = vmatprep.subr.bf16.mxu0 %v983
        %1303 = vmatpush1.bf16.msra.mxu0 %v982
        %1304 = vmatprep.subr.bf16.mxu0 %v981
        %1305 = vmatpush1.bf16.msra.mxu0 %v980
        %1306 = vmatprep.subr.bf16.mxu0 %v1011
        %1307 = vmatpush2.bf16.msra.mxu0 %v1010
        %1308 = vmatprep.subr.bf16.mxu0 %v1009
        %1309 = vmatpush2.bf16.msra.mxu0 %v1008
        %1310 = vmatprep.subr.bf16.mxu0 %v1007
        %1311 = vmatpush2.bf16.msra.mxu0 %v1006
        %1312 = vmatprep.subr.bf16.mxu0 %v1005
        %1313 = vmatpush2.bf16.msra.mxu0 %v1004
        %1314 = vmatprep.subr.bf16.mxu0 %v1003
        %1315 = vmatpush2.bf16.msra.mxu0 %v1002
        %1316 = vmatprep.subr.bf16.mxu0 %v1001
        %1317 = vmatpush2.bf16.msra.mxu0 %v1000
        %1318 = vmatprep.subr.bf16.mxu0 %v999
        %1319 = vmatpush2.bf16.msra.mxu0 %v998
        %1320 = vmatprep.subr.bf16.mxu0 %v997
        %1321 = vmatpush2.bf16.msra.mxu0 %v996
        %1322 = vmatprep.mubr.bf16.mxu0 %v305
        %1323 = vmatmul.mubr.bf16.gmra.mxu0 %v293
        %v1324 = vpop.f32.mrf.mxu0
        %v1325 = vadd.f32 %v1282, %v1324
        %v1326 = vpop.f32.mrf.mxu0
        %v1327 = vadd.f32 %v1284, %v1326
        %v1328 = vpop.f32.mrf.mxu0
        %v1329 = vadd.f32 %v1286, %v1328
        %v1330 = vpop.f32.mrf.mxu0
        %v1331 = vadd.f32 %v1288, %v1330
        %1332 = vdwg.mxu0
        %1333 = vmatprep.subr.bf16.mxu0 %v1027
        %1334 = vmatpush1.bf16.msra.mxu0 %v1026
        %1335 = vmatprep.subr.bf16.mxu0 %v1025
        %1336 = vmatpush1.bf16.msra.mxu0 %v1024
        %1337 = vmatprep.subr.bf16.mxu0 %v1023
        %1338 = vmatpush1.bf16.msra.mxu0 %v1022
        %1339 = vmatprep.subr.bf16.mxu0 %v1021
        %1340 = vmatpush1.bf16.msra.mxu0 %v1020
        %1341 = vmatprep.subr.bf16.mxu0 %v1019
        %1342 = vmatpush1.bf16.msra.mxu0 %v1018
        %1343 = vmatprep.subr.bf16.mxu0 %v1017
        %1344 = vmatpush1.bf16.msra.mxu0 %v1016
        %1345 = vmatprep.subr.bf16.mxu0 %v1015
        %1346 = vmatpush1.bf16.msra.mxu0 %v1014
        %1347 = vmatprep.subr.bf16.mxu0 %v1013
        %1348 = vmatpush1.bf16.msra.mxu0 %v1012
        %1349 = vmatprep.subr.bf16.mxu0 %v1043
        %1350 = vmatpush2.bf16.msra.mxu0 %v1042
        %1351 = vmatprep.subr.bf16.mxu0 %v1041
        %1352 = vmatpush2.bf16.msra.mxu0 %v1040
        %1353 = vmatprep.subr.bf16.mxu0 %v1039
        %1354 = vmatpush2.bf16.msra.mxu0 %v1038
        %1355 = vmatprep.subr.bf16.mxu0 %v1037
        %1356 = vmatpush2.bf16.msra.mxu0 %v1036
        %1357 = vmatprep.subr.bf16.mxu0 %v1035
        %1358 = vmatpush2.bf16.msra.mxu0 %v1034
        %1359 = vmatprep.subr.bf16.mxu0 %v1033
        %1360 = vmatpush2.bf16.msra.mxu0 %v1032
        %1361 = vmatprep.subr.bf16.mxu0 %v1031
        %1362 = vmatpush2.bf16.msra.mxu0 %v1030
        %1363 = vmatprep.subr.bf16.mxu0 %v1029
        %1364 = vmatpush2.bf16.msra.mxu0 %v1028
        %1365 = vmatprep.mubr.bf16.mxu0 %v321
        %1366 = vmatmul.mubr.bf16.gmra.mxu0 %v318
        %v1367 = vpop.f32.mrf.mxu0
        %v1368 = vadd.f32 %v1325, %v1367
        %v1369 = vpop.f32.mrf.mxu0
        %v1370 = vadd.f32 %v1327, %v1369
        %v1371 = vpop.f32.mrf.mxu0
        %v1372 = vadd.f32 %v1329, %v1371
        %v1373 = vpop.f32.mrf.mxu0
        %v1374 = vadd.f32 %v1331, %v1373
        %1375 = vdwg.mxu0
        %1376 = vmatprep.subr.bf16.mxu0 %v1059
        %1377 = vmatpush1.bf16.msra.mxu0 %v1058
        %1378 = vmatprep.subr.bf16.mxu0 %v1057
        %1379 = vmatpush1.bf16.msra.mxu0 %v1056
        %1380 = vmatprep.subr.bf16.mxu0 %v1055
        %1381 = vmatpush1.bf16.msra.mxu0 %v1054
        %1382 = vmatprep.subr.bf16.mxu0 %v1053
        %1383 = vmatpush1.bf16.msra.mxu0 %v1052
        %1384 = vmatprep.subr.bf16.mxu0 %v1051
        %1385 = vmatpush1.bf16.msra.mxu0 %v1050
        %1386 = vmatprep.subr.bf16.mxu0 %v1049
        %1387 = vmatpush1.bf16.msra.mxu0 %v1048
        %1388 = vmatprep.subr.bf16.mxu0 %v1047
        %1389 = vmatpush1.bf16.msra.mxu0 %v1046
        %1390 = vmatprep.subr.bf16.mxu0 %v1045
        %1391 = vmatpush1.bf16.msra.mxu0 %v1044
        %1392 = vmatprep.subr.bf16.mxu0 0
        %1393 = vmatpush2.bf16.msra.mxu0 0
        %1394 = vmatprep.subr.bf16.mxu0 0
        %1395 = vmatpush2.bf16.msra.mxu0 0
        %1396 = vmatprep.subr.bf16.mxu0 0
        %1397 = vmatpush2.bf16.msra.mxu0 0
        %1398 = vmatprep.subr.bf16.mxu0 0
        %1399 = vmatpush2.bf16.msra.mxu0 0
        %1400 = vmatprep.subr.bf16.mxu0 0
        %1401 = vmatpush2.bf16.msra.mxu0 0
        %1402 = vmatprep.subr.bf16.mxu0 0
        %1403 = vmatpush2.bf16.msra.mxu0 0
        %1404 = vmatprep.subr.bf16.mxu0 0
        %1405 = vmatpush2.bf16.msra.mxu0 0
        %1406 = vmatprep.subr.bf16.mxu0 0
        %1407 = vmatpush2.bf16.msra.mxu0 0
        %1408 = vmatprep.mubr.bf16.mxu0 0
        %1409 = vmatmul.mubr.bf16.gmra.mxu0 %v324
        %v1410 = vpop.f32.mrf.mxu0
        %v1411 = vadd.f32 %v1368, %v1410
        %v1412 = vpop.f32.mrf.mxu0
        %v1413 = vadd.f32 %v1370, %v1412
        %v1414 = vpop.f32.mrf.mxu0
        %v1415 = vadd.f32 %v1372, %v1414
        %v1416 = vpop.f32.mrf.mxu0
        %v1417 = vadd.f32 %v1374, %v1416
        %1418 = vdwg.mxu0
        %v1419 = vmax.f32 %v1411, 0.0
        %v1420 = vmax.f32 %v1413, 0.0
        %v1421 = vmax.f32 %v1415, 0.0
        %v1422 = vmax.f32 %v1417, 0.0
        %1423 = vst [vmem:[#allocation2] sm:$0xff] 0.0
        %1424 = vst [vmem:[#allocation2 + $0x8] sm:$0xff] 0.0
        %1425 = vst [vmem:[#allocation2 + $0x10] sm:$0xff] 0.0
        %1426 = vst [vmem:[#allocation2 + $0x18] sm:$0xff] 0.0
        %1427 = vst [vmem:[#allocation2 + $0x20] sm:$0xff] 0.0
        %1428 = vst [vmem:[#allocation2 + $0x28] sm:$0xff] 0.0
        %1429 = vst [vmem:[#allocation2 + $0x30] sm:$0x3] 0.0
        %1430 = vst [vmem:[#allocation2 + $0x38] sm:$0x3] 0.0
        %1431 = vst [vmem:[#allocation2 + $0x40] sm:$0x3] 0.0
        %vm1436 = vcmask 1040384
        %v1437 = vrot.slane %v1419, 7
        %v1438 = vrot.slane %v1420, 7
        %v1439 = vrot.slane %v1421, 7
        %v1440 = vsel %vm1436, %v1437, %v1439
        %v1441 = vrot.slane %v1422, 7
        %v1442 = vsel %vm1436, %v1438, %v1441
        %1443 = vrot.lane.b32.xlu0 %v1437, 16
        %v1444 = vpop.permute.xlu0 %1443
        %1445 = vrot.lane.b32.xlu0 %v1438, 16
        %v1446 = vpop.permute.xlu0 %1445
        %1447 = vrot.lane.b32.xlu0 %v1440, 16
        %v1448 = vpop.permute.xlu0 %1447
        %1449 = vrot.lane.b32.xlu0 %v1442, 16
        %v1450 = vpop.permute.xlu0 %1449
        %1451 = vrot.lane.b32.xlu0 %v1439, 16
        %v1452 = vpop.permute.xlu0 %1451
        %1453 = vrot.lane.b32.xlu0 %v1441, 16
        %v1454 = vpop.permute.xlu0 %1453
        %vm1455 = vcmask 130048
        %v1456 = vsel %vm1455, %v1444, %v1446
        %v1457 = vsel %vm1455, %v1448, %v1450
        %v1458 = vsel %vm1455, %v1452, %v1454
        %vm1468 = vcmask 1047681
        %1469 = vst.msk [vmem:[#allocation2] sm:$0xfe] %vm1468, %v1444
        %1470 = vst [vmem:[#allocation2 + $0x8] sm:$0xfe] %v1456
        %vm1471 = vcmask 130049
        %1472 = vst.msk [vmem:[#allocation2 + $0x10] sm:$0xfe] %vm1471, %v1446
        %vm1473 = vcmask 1047680
        %1474 = vst.msk [vmem:[#allocation2 + $0x18] sm:$0xff] %vm1473, %v1448
        %1475 = vst [vmem:[#allocation2 + $0x20] sm:$0xff] %v1457
        %1476 = vst.msk [vmem:[#allocation2 + $0x28] sm:$0xff] %vm1455, %v1450
        %vm1477 = vcmask 1040512
        %1478 = vst.msk [vmem:[#allocation2 + $0x30] sm:$0x1] %vm1477, %v1452
        %1479 = vst [vmem:[#allocation2 + $0x38] sm:$0x1] %v1458
        %vm1480 = vcmask 122880
        %1481 = vst.msk [vmem:[#allocation2 + $0x40] sm:$0x1] %vm1480, %v1454
        %v1482 = vld [vmem:[#allocation2] sm:$0xff]
        %v1483 = vld [vmem:[#allocation2 + $0x8] sm:$0xff]
        %v1484 = vld [vmem:[#allocation2 + $0x10] sm:$0xff]
        %v1485 = vld [vmem:[#allocation2 + $0x18] sm:$0xff]
        %v1486 = vld [vmem:[#allocation2 + $0x20] sm:$0xff]
        %v1487 = vld [vmem:[#allocation2 + $0x28] sm:$0xff]
        %v1488 = vpack.c.bf16 %v1485, %v1482
        %v1489 = vpack.c.bf16 %v1486, %v1483
        %v1490 = vpack.c.bf16 %v1487, %v1484
        %v1491 = vld [vmem:[#allocation2] sm:$0xfe]
        %v1492 = vld [vmem:[#allocation2 + $0x8] sm:$0xfe]
        %v1493 = vld [vmem:[#allocation2 + $0x10] sm:$0xfe]
        %v1494 = vld [vmem:[#allocation2 + $0x30] sm:$0x1]
        %v1495 = vld [vmem:[#allocation2 + $0x38] sm:$0x1]
        %v1496 = vld [vmem:[#allocation2 + $0x40] sm:$0x1]
        %v1497 = vpack.c.bf16 %v1485, %v1491
        %v1498 = vpack.c.bf16 %v1486, %v1492
        %v1499 = vpack.c.bf16 %v1487, %v1493
        %v1500 = vpack.c.bf16 %v1494, %v1494
        %v1501 = vpack.c.bf16 %v1495, %v1495
        %v1502 = vpack.c.bf16 %v1496, %v1496
        %v1503 = vld [vmem:[#allocation2] sm:$0xfc]
        %v1504 = vld [vmem:[#allocation2 + $0x8] sm:$0xfc]
        %v1505 = vld [vmem:[#allocation2 + $0x10] sm:$0xfc]
        %v1506 = vld [vmem:[#allocation2 + $0x30] sm:$0x3]
        %v1507 = vld [vmem:[#allocation2 + $0x38] sm:$0x3]
        %v1508 = vld [vmem:[#allocation2 + $0x40] sm:$0x3]
        %v1509 = vpack.c.bf16 %v1485, %v1503
        %v1510 = vpack.c.bf16 %v1486, %v1504
        %v1511 = vpack.c.bf16 %v1487, %v1505
        %v1512 = vpack.c.bf16 %v1506, %v1506
        %v1513 = vpack.c.bf16 %v1507, %v1507
        %v1514 = vpack.c.bf16 %v1508, %v1508
        %v1516 = vshrl.u32 %v1497, 16
        %v1518 = vshll.u32 %v1497, 16
        %v1520 = vrot.slane %v1518, 1
        %v1521 = vor.u32 %v1516, %v1520
        %v1523 = vshll.u32 %v1500, 16
        %v1525 = vrot.slane %v1523, 1
        %v1526 = vsel %vm269, %v1521, %v1525
        %v1528 = vshrl.u32 %v1498, 16
        %v1530 = vshll.u32 %v1498, 16
        %v1532 = vrot.slane %v1530, 1
        %v1533 = vor.u32 %v1528, %v1532
        %v1535 = vshll.u32 %v1501, 16
        %v1537 = vrot.slane %v1535, 1
        %v1538 = vsel %vm269, %v1533, %v1537
        %v1540 = vshrl.u32 %v1499, 16
        %v1542 = vshll.u32 %v1499, 16
        %v1544 = vrot.slane %v1542, 1
        %v1545 = vor.u32 %v1540, %v1544
        %v1547 = vshll.u32 %v1502, 16
        %v1549 = vrot.slane %v1547, 1
        %v1550 = vsel %vm269, %v1545, %v1549
        %v1560 = vrot.slane %v1509, 1
        %v1561 = vrot.slane %v1512, 1
        %v1562 = vsel %vm315, %v1560, %v1561
        %v1563 = vrot.slane %v1510, 1
        %v1564 = vrot.slane %v1513, 1
        %v1565 = vsel %vm315, %v1563, %v1564
        %v1566 = vrot.slane %v1511, 1
        %v1567 = vrot.slane %v1514, 1
        %v1568 = vsel %vm315, %v1566, %v1567
        %v1572 = vld [vmem:[#allocation6] sm:$0xff]
        %v1573 = vld [vmem:[#allocation6 + $0x8] sm:$0xff]
        %v1574 = vld [vmem:[#allocation6 + $0x10] sm:$0xff]
        %v1575 = vld [vmem:[#allocation6 + $0x18] sm:$0xff]
        %v1576 = vld [vmem:[#allocation6 + $0x20] sm:$0xff]
        %v1577 = vld [vmem:[#allocation6 + $0x28] sm:$0xff]
        %v1578 = vld [vmem:[#allocation6 + $0x30] sm:$0xff]
        %v1579 = vld [vmem:[#allocation6 + $0x38] sm:$0xff]
        %v1580 = vld [vmem:[#allocation6 + $0x40] sm:$0xff]
        %v1581 = vld [vmem:[#allocation6 + $0x48] sm:$0xff]
        %v1582 = vld [vmem:[#allocation6 + $0x50] sm:$0xff]
        %v1583 = vld [vmem:[#allocation6 + $0x58] sm:$0xff]
        %v1584 = vld [vmem:[#allocation6 + $0x60] sm:$0xff]
        %v1585 = vld [vmem:[#allocation6 + $0x68] sm:$0xff]
        %v1586 = vld [vmem:[#allocation6 + $0x70] sm:$0xff]
        %v1587 = vld [vmem:[#allocation6 + $0x78] sm:$0xff]
        %v1588 = vld [vmem:[#allocation6 + $0x80] sm:$0xff]
        %v1589 = vld [vmem:[#allocation6 + $0x88] sm:$0xff]
        %v1590 = vld [vmem:[#allocation6 + $0x90] sm:$0xff]
        %v1591 = vld [vmem:[#allocation6 + $0x98] sm:$0xff]
        %v1592 = vld [vmem:[#allocation6 + $0xa0] sm:$0xff]
        %v1593 = vld [vmem:[#allocation6 + $0xa8] sm:$0xff]
        %v1594 = vld [vmem:[#allocation6 + $0xb0] sm:$0xff]
        %v1595 = vld [vmem:[#allocation6 + $0xb8] sm:$0xff]
        %v1596 = vld [vmem:[#allocation6 + $0xc0] sm:$0xff]
        %v1597 = vld [vmem:[#allocation6 + $0xc8] sm:$0xff]
        %v1598 = vld [vmem:[#allocation6 + $0xd0] sm:$0xff]
        %v1599 = vld [vmem:[#allocation6 + $0xd8] sm:$0xff]
        %v1600 = vld [vmem:[#allocation6 + $0xe0] sm:$0xff]
        %v1601 = vld [vmem:[#allocation6 + $0xe8] sm:$0xff]
        %v1602 = vld [vmem:[#allocation6 + $0xf0] sm:$0xff]
        %v1603 = vld [vmem:[#allocation6 + $0xf8] sm:$0xff]
        %v1604 = vld [vmem:[#allocation6 + $0x100] sm:$0xff]
        %v1605 = vld [vmem:[#allocation6 + $0x108] sm:$0xff]
        %v1606 = vld [vmem:[#allocation6 + $0x110] sm:$0xff]
        %v1607 = vld [vmem:[#allocation6 + $0x118] sm:$0xff]
        %v1608 = vld [vmem:[#allocation6 + $0x120] sm:$0xff]
        %v1609 = vld [vmem:[#allocation6 + $0x128] sm:$0xff]
        %v1610 = vld [vmem:[#allocation6 + $0x130] sm:$0xff]
        %v1611 = vld [vmem:[#allocation6 + $0x138] sm:$0xff]
        %v1612 = vld [vmem:[#allocation6 + $0x140] sm:$0xff]
        %v1613 = vld [vmem:[#allocation6 + $0x148] sm:$0xff]
        %v1614 = vld [vmem:[#allocation6 + $0x150] sm:$0xff]
        %v1615 = vld [vmem:[#allocation6 + $0x158] sm:$0xff]
        %v1616 = vld [vmem:[#allocation6 + $0x160] sm:$0xff]
        %v1617 = vld [vmem:[#allocation6 + $0x168] sm:$0xff]
        %v1618 = vld [vmem:[#allocation6 + $0x170] sm:$0xff]
        %v1619 = vld [vmem:[#allocation6 + $0x178] sm:$0xff]
        %v1620 = vld [vmem:[#allocation6 + $0x180] sm:$0xff]
        %v1621 = vld [vmem:[#allocation6 + $0x188] sm:$0xff]
        %v1622 = vld [vmem:[#allocation6 + $0x190] sm:$0xff]
        %v1623 = vld [vmem:[#allocation6 + $0x198] sm:$0xff]
        %v1624 = vld [vmem:[#allocation6 + $0x1a0] sm:$0xff]
        %v1625 = vld [vmem:[#allocation6 + $0x1a8] sm:$0xff]
        %v1626 = vld [vmem:[#allocation6 + $0x1b0] sm:$0xff]
        %v1627 = vld [vmem:[#allocation6 + $0x1b8] sm:$0xff]
        %v1628 = vld [vmem:[#allocation6 + $0x1c0] sm:$0xff]
        %v1629 = vld [vmem:[#allocation6 + $0x1c8] sm:$0xff]
        %v1630 = vld [vmem:[#allocation6 + $0x1d0] sm:$0xff]
        %v1631 = vld [vmem:[#allocation6 + $0x1d8] sm:$0xff]
        %v1632 = vld [vmem:[#allocation6 + $0x1e0] sm:$0xff]
        %v1633 = vld [vmem:[#allocation6 + $0x1e8] sm:$0xff]
        %v1634 = vld [vmem:[#allocation6 + $0x1f0] sm:$0xff]
        %v1635 = vld [vmem:[#allocation6 + $0x1f8] sm:$0xff]
        %v1636 = vld [vmem:[#allocation6 + $0x200] sm:$0xff]
        %v1637 = vld [vmem:[#allocation6 + $0x208] sm:$0xff]
        %v1638 = vld [vmem:[#allocation6 + $0x210] sm:$0xff]
        %v1639 = vld [vmem:[#allocation6 + $0x218] sm:$0xff]
        %v1640 = vld [vmem:[#allocation6 + $0x220] sm:$0xff]
        %v1641 = vld [vmem:[#allocation6 + $0x228] sm:$0xff]
        %v1642 = vld [vmem:[#allocation6 + $0x230] sm:$0xff]
        %v1643 = vld [vmem:[#allocation6 + $0x238] sm:$0xff]
        %v1644 = vld [vmem:[#allocation6 + $0x240] sm:$0xff]
        %v1645 = vld [vmem:[#allocation6 + $0x248] sm:$0xff]
        %v1646 = vld [vmem:[#allocation6 + $0x250] sm:$0xff]
        %v1647 = vld [vmem:[#allocation6 + $0x258] sm:$0xff]
        %v1648 = vld [vmem:[#allocation6 + $0x260] sm:$0xff]
        %v1649 = vld [vmem:[#allocation6 + $0x268] sm:$0xff]
        %v1650 = vld [vmem:[#allocation6 + $0x270] sm:$0xff]
        %v1651 = vld [vmem:[#allocation6 + $0x278] sm:$0xff]
        %v1652 = vld [vmem:[#allocation6 + $0x280] sm:$0xff]
        %v1653 = vld [vmem:[#allocation6 + $0x288] sm:$0xff]
        %v1654 = vld [vmem:[#allocation6 + $0x290] sm:$0xff]
        %v1655 = vld [vmem:[#allocation6 + $0x298] sm:$0xff]
        %v1656 = vld [vmem:[#allocation6 + $0x2a0] sm:$0xff]
        %v1657 = vld [vmem:[#allocation6 + $0x2a8] sm:$0xff]
        %v1658 = vld [vmem:[#allocation6 + $0x2b0] sm:$0xff]
        %v1659 = vld [vmem:[#allocation6 + $0x2b8] sm:$0xff]
        %v1660 = vld [vmem:[#allocation6 + $0x2c0] sm:$0xff]
        %v1661 = vld [vmem:[#allocation6 + $0x2c8] sm:$0xff]
        %v1662 = vld [vmem:[#allocation6 + $0x2d0] sm:$0xff]
        %v1663 = vld [vmem:[#allocation6 + $0x2d8] sm:$0xff]
        %v1664 = vld [vmem:[#allocation6 + $0x2e0] sm:$0xff]
        %v1665 = vld [vmem:[#allocation6 + $0x2e8] sm:$0xff]
        %v1666 = vld [vmem:[#allocation6 + $0x2f0] sm:$0xff]
        %v1667 = vld [vmem:[#allocation6 + $0x2f8] sm:$0xff]
        %v1668 = vld [vmem:[#allocation6 + $0x300] sm:$0xff]
        %v1669 = vld [vmem:[#allocation6 + $0x308] sm:$0xff]
        %v1670 = vld [vmem:[#allocation6 + $0x310] sm:$0xff]
        %v1671 = vld [vmem:[#allocation6 + $0x318] sm:$0xff]
        %v1672 = vld [vmem:[#allocation6 + $0x320] sm:$0xff]
        %v1673 = vld [vmem:[#allocation6 + $0x328] sm:$0xff]
        %v1674 = vld [vmem:[#allocation6 + $0x330] sm:$0xff]
        %v1675 = vld [vmem:[#allocation6 + $0x338] sm:$0xff]
        %v1676 = vld [vmem:[#allocation6 + $0x340] sm:$0xff]
        %v1677 = vld [vmem:[#allocation6 + $0x348] sm:$0xff]
        %v1678 = vld [vmem:[#allocation6 + $0x350] sm:$0xff]
        %v1679 = vld [vmem:[#allocation6 + $0x358] sm:$0xff]
        %v1680 = vld [vmem:[#allocation6 + $0x360] sm:$0xff]
        %v1681 = vld [vmem:[#allocation6 + $0x368] sm:$0xff]
        %v1682 = vld [vmem:[#allocation6 + $0x370] sm:$0xff]
        %v1683 = vld [vmem:[#allocation6 + $0x378] sm:$0xff]
        %v1684 = vld [vmem:[#allocation6 + $0x380] sm:$0xff]
        %v1685 = vld [vmem:[#allocation6 + $0x388] sm:$0xff]
        %v1686 = vld [vmem:[#allocation6 + $0x390] sm:$0xff]
        %v1687 = vld [vmem:[#allocation6 + $0x398] sm:$0xff]
        %v1688 = vld [vmem:[#allocation6 + $0x3a0] sm:$0xff]
        %v1689 = vld [vmem:[#allocation6 + $0x3a8] sm:$0xff]
        %v1690 = vld [vmem:[#allocation6 + $0x3b0] sm:$0xff]
        %v1691 = vld [vmem:[#allocation6 + $0x3b8] sm:$0xff]
        %v1692 = vld [vmem:[#allocation6 + $0x3c0] sm:$0xff]
        %v1693 = vld [vmem:[#allocation6 + $0x3c8] sm:$0xff]
        %v1694 = vld [vmem:[#allocation6 + $0x3d0] sm:$0xff]
        %v1695 = vld [vmem:[#allocation6 + $0x3d8] sm:$0xff]
        %v1696 = vld [vmem:[#allocation6 + $0x3e0] sm:$0xff]
        %v1697 = vld [vmem:[#allocation6 + $0x3e8] sm:$0xff]
        %v1698 = vld [vmem:[#allocation6 + $0x3f0] sm:$0xff]
        %v1699 = vld [vmem:[#allocation6 + $0x3f8] sm:$0xff]
        %v1700 = vld [vmem:[#allocation6 + $0x400] sm:$0xff]
        %v1701 = vld [vmem:[#allocation6 + $0x408] sm:$0xff]
        %v1702 = vld [vmem:[#allocation6 + $0x410] sm:$0xff]
        %v1703 = vld [vmem:[#allocation6 + $0x418] sm:$0xff]
        %v1704 = vld [vmem:[#allocation6 + $0x420] sm:$0xff]
        %v1705 = vld [vmem:[#allocation6 + $0x428] sm:$0xff]
        %v1706 = vld [vmem:[#allocation6 + $0x430] sm:$0xff]
        %v1707 = vld [vmem:[#allocation6 + $0x438] sm:$0xff]
        %v1708 = vld [vmem:[#allocation6 + $0x440] sm:$0xff]
        %v1709 = vld [vmem:[#allocation6 + $0x448] sm:$0xff]
        %v1710 = vld [vmem:[#allocation6 + $0x450] sm:$0xff]
        %v1711 = vld [vmem:[#allocation6 + $0x458] sm:$0xff]
        %v1712 = vld [vmem:[#allocation6 + $0x460] sm:$0xff]
        %v1713 = vld [vmem:[#allocation6 + $0x468] sm:$0xff]
        %v1714 = vld [vmem:[#allocation6 + $0x470] sm:$0xff]
        %v1715 = vld [vmem:[#allocation6 + $0x478] sm:$0xff]
        %v1716 = vld [vmem:[%s4] sm:$0x3]
        %v1718 = vlaneseq
        %v1719 = vshrl.u32 %v1718, 7
        %v1720 = vsub.s32 0, %v1719
        %v1721 = vrot.slane %v1716, %v1720
        %v1722 = vlaneseq
        %v1723 = vshrl.u32 %v1722, 7
        %v1724 = vsub.s32 1, %v1723
        %v1725 = vrot.slane %v1716, %v1724
        %v1872 = vunpack.c.l.b16 %v1572
        %v1873 = vunpack.c.h.b16 %v1572
        %v1874 = vunpack.c.l.b16 %v1573
        %v1875 = vunpack.c.h.b16 %v1573
        %v1876 = vunpack.c.l.b16 %v1574
        %v1877 = vunpack.c.h.b16 %v1574
        %v1878 = vunpack.c.l.b16 %v1575
        %v1879 = vunpack.c.h.b16 %v1575
        %v1880 = vunpack.c.l.b16 %v1576
        %v1881 = vunpack.c.h.b16 %v1576
        %v1882 = vunpack.c.l.b16 %v1577
        %v1883 = vunpack.c.h.b16 %v1577
        %v1884 = vunpack.c.l.b16 %v1578
        %v1885 = vunpack.c.h.b16 %v1578
        %v1886 = vunpack.c.l.b16 %v1579
        %v1887 = vunpack.c.h.b16 %v1579
        %v1888 = vunpack.c.l.b16 %v1580
        %v1889 = vunpack.c.h.b16 %v1580
        %v1890 = vunpack.c.l.b16 %v1581
        %v1891 = vunpack.c.h.b16 %v1581
        %v1892 = vunpack.c.l.b16 %v1582
        %v1893 = vunpack.c.h.b16 %v1582
        %v1894 = vunpack.c.l.b16 %v1583
        %v1895 = vunpack.c.h.b16 %v1583
        %v1896 = vunpack.c.l.b16 %v1584
        %v1897 = vunpack.c.h.b16 %v1584
        %v1898 = vunpack.c.l.b16 %v1585
        %v1899 = vunpack.c.h.b16 %v1585
        %v1900 = vunpack.c.l.b16 %v1586
        %v1901 = vunpack.c.h.b16 %v1586
        %v1902 = vunpack.c.l.b16 %v1587
        %v1903 = vunpack.c.h.b16 %v1587
        %v1904 = vunpack.c.l.b16 %v1588
        %v1905 = vunpack.c.h.b16 %v1588
        %v1906 = vunpack.c.l.b16 %v1589
        %v1907 = vunpack.c.h.b16 %v1589
        %v1908 = vunpack.c.l.b16 %v1590
        %v1909 = vunpack.c.h.b16 %v1590
        %v1910 = vunpack.c.l.b16 %v1591
        %v1911 = vunpack.c.h.b16 %v1591
        %v1912 = vunpack.c.l.b16 %v1592
        %v1913 = vunpack.c.h.b16 %v1592
        %v1914 = vunpack.c.l.b16 %v1593
        %v1915 = vunpack.c.h.b16 %v1593
        %v1916 = vunpack.c.l.b16 %v1594
        %v1917 = vunpack.c.h.b16 %v1594
        %v1918 = vunpack.c.l.b16 %v1595
        %v1919 = vunpack.c.h.b16 %v1595
        %v1920 = vunpack.c.l.b16 %v1596
        %v1921 = vunpack.c.h.b16 %v1596
        %v1922 = vunpack.c.l.b16 %v1597
        %v1923 = vunpack.c.h.b16 %v1597
        %v1924 = vunpack.c.l.b16 %v1598
        %v1925 = vunpack.c.h.b16 %v1598
        %v1926 = vunpack.c.l.b16 %v1599
        %v1927 = vunpack.c.h.b16 %v1599
        %v1928 = vunpack.c.l.b16 %v1600
        %v1929 = vunpack.c.h.b16 %v1600
        %v1930 = vunpack.c.l.b16 %v1601
        %v1931 = vunpack.c.h.b16 %v1601
        %v1932 = vunpack.c.l.b16 %v1602
        %v1933 = vunpack.c.h.b16 %v1602
        %v1934 = vunpack.c.l.b16 %v1603
        %v1935 = vunpack.c.h.b16 %v1603
        %v1936 = vunpack.c.l.b16 %v1604
        %v1937 = vunpack.c.h.b16 %v1604
        %v1938 = vunpack.c.l.b16 %v1605
        %v1939 = vunpack.c.h.b16 %v1605
        %v1940 = vunpack.c.l.b16 %v1606
        %v1941 = vunpack.c.h.b16 %v1606
        %v1942 = vunpack.c.l.b16 %v1607
        %v1943 = vunpack.c.h.b16 %v1607
        %v1944 = vunpack.c.l.b16 %v1608
        %v1945 = vunpack.c.h.b16 %v1608
        %v1946 = vunpack.c.l.b16 %v1609
        %v1947 = vunpack.c.h.b16 %v1609
        %v1948 = vunpack.c.l.b16 %v1610
        %v1949 = vunpack.c.h.b16 %v1610
        %v1950 = vunpack.c.l.b16 %v1611
        %v1951 = vunpack.c.h.b16 %v1611
        %v1952 = vunpack.c.l.b16 %v1612
        %v1953 = vunpack.c.h.b16 %v1612
        %v1954 = vunpack.c.l.b16 %v1613
        %v1955 = vunpack.c.h.b16 %v1613
        %v1956 = vunpack.c.l.b16 %v1614
        %v1957 = vunpack.c.h.b16 %v1614
        %v1958 = vunpack.c.l.b16 %v1615
        %v1959 = vunpack.c.h.b16 %v1615
        %v1960 = vunpack.c.l.b16 %v1616
        %v1961 = vunpack.c.h.b16 %v1616
        %v1962 = vunpack.c.l.b16 %v1617
        %v1963 = vunpack.c.h.b16 %v1617
        %v1964 = vunpack.c.l.b16 %v1618
        %v1965 = vunpack.c.h.b16 %v1618
        %v1966 = vunpack.c.l.b16 %v1619
        %v1967 = vunpack.c.h.b16 %v1619
        %v1968 = vunpack.c.l.b16 %v1620
        %v1969 = vunpack.c.h.b16 %v1620
        %v1970 = vunpack.c.l.b16 %v1621
        %v1971 = vunpack.c.h.b16 %v1621
        %v1972 = vunpack.c.l.b16 %v1622
        %v1973 = vunpack.c.h.b16 %v1622
        %v1974 = vunpack.c.l.b16 %v1623
        %v1975 = vunpack.c.h.b16 %v1623
        %v1976 = vunpack.c.l.b16 %v1624
        %v1977 = vunpack.c.h.b16 %v1624
        %v1978 = vunpack.c.l.b16 %v1625
        %v1979 = vunpack.c.h.b16 %v1625
        %v1980 = vunpack.c.l.b16 %v1626
        %v1981 = vunpack.c.h.b16 %v1626
        %v1982 = vunpack.c.l.b16 %v1627
        %v1983 = vunpack.c.h.b16 %v1627
        %v1984 = vunpack.c.l.b16 %v1628
        %v1985 = vunpack.c.h.b16 %v1628
        %v1986 = vunpack.c.l.b16 %v1629
        %v1987 = vunpack.c.h.b16 %v1629
        %v1988 = vunpack.c.l.b16 %v1630
        %v1989 = vunpack.c.h.b16 %v1630
        %v1990 = vunpack.c.l.b16 %v1631
        %v1991 = vunpack.c.h.b16 %v1631
        %v1992 = vunpack.c.l.b16 %v1632
        %v1993 = vunpack.c.h.b16 %v1632
        %v1994 = vunpack.c.l.b16 %v1633
        %v1995 = vunpack.c.h.b16 %v1633
        %v1996 = vunpack.c.l.b16 %v1634
        %v1997 = vunpack.c.h.b16 %v1634
        %v1998 = vunpack.c.l.b16 %v1635
        %v1999 = vunpack.c.h.b16 %v1635
        %v2000 = vunpack.c.l.b16 %v1636
        %v2001 = vunpack.c.h.b16 %v1636
        %v2002 = vunpack.c.l.b16 %v1637
        %v2003 = vunpack.c.h.b16 %v1637
        %v2004 = vunpack.c.l.b16 %v1638
        %v2005 = vunpack.c.h.b16 %v1638
        %v2006 = vunpack.c.l.b16 %v1639
        %v2007 = vunpack.c.h.b16 %v1639
        %v2008 = vunpack.c.l.b16 %v1640
        %v2009 = vunpack.c.h.b16 %v1640
        %v2010 = vunpack.c.l.b16 %v1641
        %v2011 = vunpack.c.h.b16 %v1641
        %v2012 = vunpack.c.l.b16 %v1642
        %v2013 = vunpack.c.h.b16 %v1642
        %v2014 = vunpack.c.l.b16 %v1643
        %v2015 = vunpack.c.h.b16 %v1643
        %v2016 = vunpack.c.l.b16 %v1644
        %v2017 = vunpack.c.h.b16 %v1644
        %v2018 = vunpack.c.l.b16 %v1645
        %v2019 = vunpack.c.h.b16 %v1645
        %v2020 = vunpack.c.l.b16 %v1646
        %v2021 = vunpack.c.h.b16 %v1646
        %v2022 = vunpack.c.l.b16 %v1647
        %v2023 = vunpack.c.h.b16 %v1647
        %v2024 = vunpack.c.l.b16 %v1648
        %v2025 = vunpack.c.h.b16 %v1648
        %v2026 = vunpack.c.l.b16 %v1649
        %v2027 = vunpack.c.h.b16 %v1649
        %v2028 = vunpack.c.l.b16 %v1650
        %v2029 = vunpack.c.h.b16 %v1650
        %v2030 = vunpack.c.l.b16 %v1651
        %v2031 = vunpack.c.h.b16 %v1651
        %v2032 = vunpack.c.l.b16 %v1652
        %v2033 = vunpack.c.h.b16 %v1652
        %v2034 = vunpack.c.l.b16 %v1653
        %v2035 = vunpack.c.h.b16 %v1653
        %v2036 = vunpack.c.l.b16 %v1654
        %v2037 = vunpack.c.h.b16 %v1654
        %v2038 = vunpack.c.l.b16 %v1655
        %v2039 = vunpack.c.h.b16 %v1655
        %v2040 = vunpack.c.l.b16 %v1656
        %v2041 = vunpack.c.h.b16 %v1656
        %v2042 = vunpack.c.l.b16 %v1657
        %v2043 = vunpack.c.h.b16 %v1657
        %v2044 = vunpack.c.l.b16 %v1658
        %v2045 = vunpack.c.h.b16 %v1658
        %v2046 = vunpack.c.l.b16 %v1659
        %v2047 = vunpack.c.h.b16 %v1659
        %v2048 = vunpack.c.l.b16 %v1660
        %v2049 = vunpack.c.h.b16 %v1660
        %v2050 = vunpack.c.l.b16 %v1661
        %v2051 = vunpack.c.h.b16 %v1661
        %v2052 = vunpack.c.l.b16 %v1662
        %v2053 = vunpack.c.h.b16 %v1662
        %v2054 = vunpack.c.l.b16 %v1663
        %v2055 = vunpack.c.h.b16 %v1663
        %v2056 = vunpack.c.l.b16 %v1664
        %v2057 = vunpack.c.h.b16 %v1664
        %v2058 = vunpack.c.l.b16 %v1665
        %v2059 = vunpack.c.h.b16 %v1665
        %v2060 = vunpack.c.l.b16 %v1666
        %v2061 = vunpack.c.h.b16 %v1666
        %v2062 = vunpack.c.l.b16 %v1667
        %v2063 = vunpack.c.h.b16 %v1667
        %v2064 = vunpack.c.l.b16 %v1668
        %v2065 = vunpack.c.h.b16 %v1668
        %v2066 = vunpack.c.l.b16 %v1669
        %v2067 = vunpack.c.h.b16 %v1669
        %v2068 = vunpack.c.l.b16 %v1670
        %v2069 = vunpack.c.h.b16 %v1670
        %v2070 = vunpack.c.l.b16 %v1671
        %v2071 = vunpack.c.h.b16 %v1671
        %v2072 = vunpack.c.l.b16 %v1672
        %v2073 = vunpack.c.h.b16 %v1672
        %v2074 = vunpack.c.l.b16 %v1673
        %v2075 = vunpack.c.h.b16 %v1673
        %v2076 = vunpack.c.l.b16 %v1674
        %v2077 = vunpack.c.h.b16 %v1674
        %v2078 = vunpack.c.l.b16 %v1675
        %v2079 = vunpack.c.h.b16 %v1675
        %v2080 = vunpack.c.l.b16 %v1676
        %v2081 = vunpack.c.h.b16 %v1676
        %v2082 = vunpack.c.l.b16 %v1677
        %v2083 = vunpack.c.h.b16 %v1677
        %v2084 = vunpack.c.l.b16 %v1678
        %v2085 = vunpack.c.h.b16 %v1678
        %v2086 = vunpack.c.l.b16 %v1679
        %v2087 = vunpack.c.h.b16 %v1679
        %v2088 = vunpack.c.l.b16 %v1680
        %v2089 = vunpack.c.h.b16 %v1680
        %v2090 = vunpack.c.l.b16 %v1681
        %v2091 = vunpack.c.h.b16 %v1681
        %v2092 = vunpack.c.l.b16 %v1682
        %v2093 = vunpack.c.h.b16 %v1682
        %v2094 = vunpack.c.l.b16 %v1683
        %v2095 = vunpack.c.h.b16 %v1683
        %v2096 = vunpack.c.l.b16 %v1684
        %v2097 = vunpack.c.h.b16 %v1684
        %v2098 = vunpack.c.l.b16 %v1685
        %v2099 = vunpack.c.h.b16 %v1685
        %v2100 = vunpack.c.l.b16 %v1686
        %v2101 = vunpack.c.h.b16 %v1686
        %v2102 = vunpack.c.l.b16 %v1687
        %v2103 = vunpack.c.h.b16 %v1687
        %v2104 = vunpack.c.l.b16 %v1688
        %v2105 = vunpack.c.h.b16 %v1688
        %v2106 = vunpack.c.l.b16 %v1689
        %v2107 = vunpack.c.h.b16 %v1689
        %v2108 = vunpack.c.l.b16 %v1690
        %v2109 = vunpack.c.h.b16 %v1690
        %v2110 = vunpack.c.l.b16 %v1691
        %v2111 = vunpack.c.h.b16 %v1691
        %v2112 = vunpack.c.l.b16 %v1692
        %v2113 = vunpack.c.h.b16 %v1692
        %v2114 = vunpack.c.l.b16 %v1693
        %v2115 = vunpack.c.h.b16 %v1693
        %v2116 = vunpack.c.l.b16 %v1694
        %v2117 = vunpack.c.h.b16 %v1694
        %v2118 = vunpack.c.l.b16 %v1695
        %v2119 = vunpack.c.h.b16 %v1695
        %v2120 = vunpack.c.l.b16 %v1696
        %v2121 = vunpack.c.h.b16 %v1696
        %v2122 = vunpack.c.l.b16 %v1697
        %v2123 = vunpack.c.h.b16 %v1697
        %v2124 = vunpack.c.l.b16 %v1698
        %v2125 = vunpack.c.h.b16 %v1698
        %v2126 = vunpack.c.l.b16 %v1699
        %v2127 = vunpack.c.h.b16 %v1699
        %v2128 = vunpack.c.l.b16 %v1700
        %v2129 = vunpack.c.h.b16 %v1700
        %v2130 = vunpack.c.l.b16 %v1701
        %v2131 = vunpack.c.h.b16 %v1701
        %v2132 = vunpack.c.l.b16 %v1702
        %v2133 = vunpack.c.h.b16 %v1702
        %v2134 = vunpack.c.l.b16 %v1703
        %v2135 = vunpack.c.h.b16 %v1703
        %v2136 = vunpack.c.l.b16 %v1704
        %v2137 = vunpack.c.h.b16 %v1704
        %v2138 = vunpack.c.l.b16 %v1705
        %v2139 = vunpack.c.h.b16 %v1705
        %v2140 = vunpack.c.l.b16 %v1706
        %v2141 = vunpack.c.h.b16 %v1706
        %v2142 = vunpack.c.l.b16 %v1707
        %v2143 = vunpack.c.h.b16 %v1707
        %v2144 = vunpack.c.l.b16 %v1708
        %v2145 = vunpack.c.h.b16 %v1708
        %v2146 = vunpack.c.l.b16 %v1709
        %v2147 = vunpack.c.h.b16 %v1709
        %v2148 = vunpack.c.l.b16 %v1710
        %v2149 = vunpack.c.h.b16 %v1710
        %v2150 = vunpack.c.l.b16 %v1711
        %v2151 = vunpack.c.h.b16 %v1711
        %v2152 = vunpack.c.l.b16 %v1712
        %v2153 = vunpack.c.h.b16 %v1712
        %v2154 = vunpack.c.l.b16 %v1713
        %v2155 = vunpack.c.h.b16 %v1713
        %v2156 = vunpack.c.l.b16 %v1714
        %v2157 = vunpack.c.h.b16 %v1714
        %v2158 = vunpack.c.l.b16 %v1715
        %v2159 = vunpack.c.h.b16 %v1715
        %v2160 = vpack.c.b16 %v1874, %v1872
        %v2161 = vpack.c.b16 %v1875, %v1873
        %v2162 = vpack.c.b16 %v1878, %v1876
        %v2163 = vpack.c.b16 %v1879, %v1877
        %v2164 = vpack.c.b16 %v1882, %v1880
        %v2165 = vpack.c.b16 %v1883, %v1881
        %v2166 = vpack.c.b16 %v1886, %v1884
        %v2167 = vpack.c.b16 %v1887, %v1885
        %v2168 = vpack.c.b16 %v1890, %v1888
        %v2169 = vpack.c.b16 %v1891, %v1889
        %v2170 = vpack.c.b16 %v1894, %v1892
        %v2171 = vpack.c.b16 %v1895, %v1893
        %v2172 = vpack.c.b16 %v1898, %v1896
        %v2173 = vpack.c.b16 %v1899, %v1897
        %v2174 = vpack.c.b16 %v1902, %v1900
        %v2175 = vpack.c.b16 %v1903, %v1901
        %v2176 = vpack.c.b16 %v1906, %v1904
        %v2177 = vpack.c.b16 %v1907, %v1905
        %v2178 = vpack.c.b16 %v1910, %v1908
        %v2179 = vpack.c.b16 %v1911, %v1909
        %v2180 = vpack.c.b16 %v1914, %v1912
        %v2181 = vpack.c.b16 %v1915, %v1913
        %v2182 = vpack.c.b16 %v1918, %v1916
        %v2183 = vpack.c.b16 %v1919, %v1917
        %v2184 = vpack.c.b16 %v1922, %v1920
        %v2185 = vpack.c.b16 %v1923, %v1921
        %v2186 = vpack.c.b16 %v1926, %v1924
        %v2187 = vpack.c.b16 %v1927, %v1925
        %v2188 = vpack.c.b16 %v1930, %v1928
        %v2189 = vpack.c.b16 %v1931, %v1929
        %v2190 = vpack.c.b16 %v1934, %v1932
        %v2191 = vpack.c.b16 %v1935, %v1933
        %v2192 = vpack.c.b16 %v1938, %v1936
        %v2193 = vpack.c.b16 %v1939, %v1937
        %v2194 = vpack.c.b16 %v1942, %v1940
        %v2195 = vpack.c.b16 %v1943, %v1941
        %v2196 = vpack.c.b16 %v1946, %v1944
        %v2197 = vpack.c.b16 %v1947, %v1945
        %v2198 = vpack.c.b16 %v1950, %v1948
        %v2199 = vpack.c.b16 %v1951, %v1949
        %v2200 = vpack.c.b16 %v1954, %v1952
        %v2201 = vpack.c.b16 %v1955, %v1953
        %v2202 = vpack.c.b16 %v1958, %v1956
        %v2203 = vpack.c.b16 %v1959, %v1957
        %v2204 = vpack.c.b16 %v1962, %v1960
        %v2205 = vpack.c.b16 %v1963, %v1961
        %v2206 = vpack.c.b16 %v1966, %v1964
        %v2207 = vpack.c.b16 %v1967, %v1965
        %v2208 = vpack.c.b16 %v1970, %v1968
        %v2209 = vpack.c.b16 %v1971, %v1969
        %v2210 = vpack.c.b16 %v1974, %v1972
        %v2211 = vpack.c.b16 %v1975, %v1973
        %v2212 = vpack.c.b16 %v1978, %v1976
        %v2213 = vpack.c.b16 %v1979, %v1977
        %v2214 = vpack.c.b16 %v1982, %v1980
        %v2215 = vpack.c.b16 %v1983, %v1981
        %v2216 = vpack.c.b16 %v1986, %v1984
        %v2217 = vpack.c.b16 %v1987, %v1985
        %v2218 = vpack.c.b16 %v1990, %v1988
        %v2219 = vpack.c.b16 %v1991, %v1989
        %v2220 = vpack.c.b16 %v1994, %v1992
        %v2221 = vpack.c.b16 %v1995, %v1993
        %v2222 = vpack.c.b16 %v1998, %v1996
        %v2223 = vpack.c.b16 %v1999, %v1997
        %v2224 = vpack.c.b16 %v2002, %v2000
        %v2225 = vpack.c.b16 %v2003, %v2001
        %v2226 = vpack.c.b16 %v2006, %v2004
        %v2227 = vpack.c.b16 %v2007, %v2005
        %v2228 = vpack.c.b16 %v2010, %v2008
        %v2229 = vpack.c.b16 %v2011, %v2009
        %v2230 = vpack.c.b16 %v2014, %v2012
        %v2231 = vpack.c.b16 %v2015, %v2013
        %v2232 = vpack.c.b16 %v2018, %v2016
        %v2233 = vpack.c.b16 %v2019, %v2017
        %v2234 = vpack.c.b16 %v2022, %v2020
        %v2235 = vpack.c.b16 %v2023, %v2021
        %v2236 = vpack.c.b16 %v2026, %v2024
        %v2237 = vpack.c.b16 %v2027, %v2025
        %v2238 = vpack.c.b16 %v2030, %v2028
        %v2239 = vpack.c.b16 %v2031, %v2029
        %v2240 = vpack.c.b16 %v2034, %v2032
        %v2241 = vpack.c.b16 %v2035, %v2033
        %v2242 = vpack.c.b16 %v2038, %v2036
        %v2243 = vpack.c.b16 %v2039, %v2037
        %v2244 = vpack.c.b16 %v2042, %v2040
        %v2245 = vpack.c.b16 %v2043, %v2041
        %v2246 = vpack.c.b16 %v2046, %v2044
        %v2247 = vpack.c.b16 %v2047, %v2045
        %v2248 = vpack.c.b16 %v2050, %v2048
        %v2249 = vpack.c.b16 %v2051, %v2049
        %v2250 = vpack.c.b16 %v2054, %v2052
        %v2251 = vpack.c.b16 %v2055, %v2053
        %v2252 = vpack.c.b16 %v2058, %v2056
        %v2253 = vpack.c.b16 %v2059, %v2057
        %v2254 = vpack.c.b16 %v2062, %v2060
        %v2255 = vpack.c.b16 %v2063, %v2061
        %v2256 = vpack.c.b16 %v2066, %v2064
        %v2257 = vpack.c.b16 %v2067, %v2065
        %v2258 = vpack.c.b16 %v2070, %v2068
        %v2259 = vpack.c.b16 %v2071, %v2069
        %v2260 = vpack.c.b16 %v2074, %v2072
        %v2261 = vpack.c.b16 %v2075, %v2073
        %v2262 = vpack.c.b16 %v2078, %v2076
        %v2263 = vpack.c.b16 %v2079, %v2077
        %v2264 = vpack.c.b16 %v2082, %v2080
        %v2265 = vpack.c.b16 %v2083, %v2081
        %v2266 = vpack.c.b16 %v2086, %v2084
        %v2267 = vpack.c.b16 %v2087, %v2085
        %v2268 = vpack.c.b16 %v2090, %v2088
        %v2269 = vpack.c.b16 %v2091, %v2089
        %v2270 = vpack.c.b16 %v2094, %v2092
        %v2271 = vpack.c.b16 %v2095, %v2093
        %v2272 = vpack.c.b16 %v2098, %v2096
        %v2273 = vpack.c.b16 %v2099, %v2097
        %v2274 = vpack.c.b16 %v2102, %v2100
        %v2275 = vpack.c.b16 %v2103, %v2101
        %v2276 = vpack.c.b16 %v2106, %v2104
        %v2277 = vpack.c.b16 %v2107, %v2105
        %v2278 = vpack.c.b16 %v2110, %v2108
        %v2279 = vpack.c.b16 %v2111, %v2109
        %v2280 = vpack.c.b16 %v2114, %v2112
        %v2281 = vpack.c.b16 %v2115, %v2113
        %v2282 = vpack.c.b16 %v2118, %v2116
        %v2283 = vpack.c.b16 %v2119, %v2117
        %v2284 = vpack.c.b16 %v2122, %v2120
        %v2285 = vpack.c.b16 %v2123, %v2121
        %v2286 = vpack.c.b16 %v2126, %v2124
        %v2287 = vpack.c.b16 %v2127, %v2125
        %v2288 = vpack.c.b16 %v2130, %v2128
        %v2289 = vpack.c.b16 %v2131, %v2129
        %v2290 = vpack.c.b16 %v2134, %v2132
        %v2291 = vpack.c.b16 %v2135, %v2133
        %v2292 = vpack.c.b16 %v2138, %v2136
        %v2293 = vpack.c.b16 %v2139, %v2137
        %v2294 = vpack.c.b16 %v2142, %v2140
        %v2295 = vpack.c.b16 %v2143, %v2141
        %v2296 = vpack.c.b16 %v2146, %v2144
        %v2297 = vpack.c.b16 %v2147, %v2145
        %v2298 = vpack.c.b16 %v2150, %v2148
        %v2299 = vpack.c.b16 %v2151, %v2149
        %v2300 = vpack.c.b16 %v2154, %v2152
        %v2301 = vpack.c.b16 %v2155, %v2153
        %v2302 = vpack.c.b16 %v2158, %v2156
        %v2303 = vpack.c.b16 %v2159, %v2157
        %2448 = vmatprep.subr.bf16.mxu0 %v2175
        %2449 = vmatpush1.bf16.msra.mxu0 %v2174
        %2450 = vmatprep.subr.bf16.mxu0 %v2173
        %2451 = vmatpush1.bf16.msra.mxu0 %v2172
        %2452 = vmatprep.subr.bf16.mxu0 %v2171
        %2453 = vmatpush1.bf16.msra.mxu0 %v2170
        %2454 = vmatprep.subr.bf16.mxu0 %v2169
        %2455 = vmatpush1.bf16.msra.mxu0 %v2168
        %2456 = vmatprep.subr.bf16.mxu0 %v2167
        %2457 = vmatpush1.bf16.msra.mxu0 %v2166
        %2458 = vmatprep.subr.bf16.mxu0 %v2165
        %2459 = vmatpush1.bf16.msra.mxu0 %v2164
        %2460 = vmatprep.subr.bf16.mxu0 %v2163
        %2461 = vmatpush1.bf16.msra.mxu0 %v2162
        %2462 = vmatprep.subr.bf16.mxu0 %v2161
        %2463 = vmatpush1.bf16.msra.mxu0 %v2160
        %2464 = vmatprep.subr.bf16.mxu0 %v2191
        %2465 = vmatpush2.bf16.msra.mxu0 %v2190
        %2466 = vmatprep.subr.bf16.mxu0 %v2189
        %2467 = vmatpush2.bf16.msra.mxu0 %v2188
        %2468 = vmatprep.subr.bf16.mxu0 %v2187
        %2469 = vmatpush2.bf16.msra.mxu0 %v2186
        %2470 = vmatprep.subr.bf16.mxu0 %v2185
        %2471 = vmatpush2.bf16.msra.mxu0 %v2184
        %2472 = vmatprep.subr.bf16.mxu0 %v2183
        %2473 = vmatpush2.bf16.msra.mxu0 %v2182
        %2474 = vmatprep.subr.bf16.mxu0 %v2181
        %2475 = vmatpush2.bf16.msra.mxu0 %v2180
        %2476 = vmatprep.subr.bf16.mxu0 %v2179
        %2477 = vmatpush2.bf16.msra.mxu0 %v2178
        %2478 = vmatprep.subr.bf16.mxu0 %v2177
        %2479 = vmatpush2.bf16.msra.mxu0 %v2176
        %2480 = vmatprep.mubr.bf16.mxu0 %v1489
        %2481 = vmatmul.mubr.bf16.gmra.mxu0 %v1488
        %v2482 = vpop.f32.mrf.mxu0
        %v2483 = vadd.f32 %v1721, %v2482
        %v2484 = vpop.f32.mrf.mxu0
        %v2485 = vadd.f32 %v1725, %v2484
        %v2486 = vpop.f32.mrf.mxu0
        %v2487 = vadd.f32 %v1721, %v2486
        %v2488 = vpop.f32.mrf.mxu0
        %v2489 = vadd.f32 %v1725, %v2488
        %2490 = vdwg.mxu0
        %2491 = vmatprep.subr.bf16.mxu0 %v2207
        %2492 = vmatpush1.bf16.msra.mxu0 %v2206
        %2493 = vmatprep.subr.bf16.mxu0 %v2205
        %2494 = vmatpush1.bf16.msra.mxu0 %v2204
        %2495 = vmatprep.subr.bf16.mxu0 %v2203
        %2496 = vmatpush1.bf16.msra.mxu0 %v2202
        %2497 = vmatprep.subr.bf16.mxu0 %v2201
        %2498 = vmatpush1.bf16.msra.mxu0 %v2200
        %2499 = vmatprep.subr.bf16.mxu0 %v2199
        %2500 = vmatpush1.bf16.msra.mxu0 %v2198
        %2501 = vmatprep.subr.bf16.mxu0 %v2197
        %2502 = vmatpush1.bf16.msra.mxu0 %v2196
        %2503 = vmatprep.subr.bf16.mxu0 %v2195
        %2504 = vmatpush1.bf16.msra.mxu0 %v2194
        %2505 = vmatprep.subr.bf16.mxu0 %v2193
        %2506 = vmatpush1.bf16.msra.mxu0 %v2192
        %2507 = vmatprep.subr.bf16.mxu0 %v2223
        %2508 = vmatpush2.bf16.msra.mxu0 %v2222
        %2509 = vmatprep.subr.bf16.mxu0 %v2221
        %2510 = vmatpush2.bf16.msra.mxu0 %v2220
        %2511 = vmatprep.subr.bf16.mxu0 %v2219
        %2512 = vmatpush2.bf16.msra.mxu0 %v2218
        %2513 = vmatprep.subr.bf16.mxu0 %v2217
        %2514 = vmatpush2.bf16.msra.mxu0 %v2216
        %2515 = vmatprep.subr.bf16.mxu0 %v2215
        %2516 = vmatpush2.bf16.msra.mxu0 %v2214
        %2517 = vmatprep.subr.bf16.mxu0 %v2213
        %2518 = vmatpush2.bf16.msra.mxu0 %v2212
        %2519 = vmatprep.subr.bf16.mxu0 %v2211
        %2520 = vmatpush2.bf16.msra.mxu0 %v2210
        %2521 = vmatprep.subr.bf16.mxu0 %v2209
        %2522 = vmatpush2.bf16.msra.mxu0 %v2208
        %2523 = vmatprep.mubr.bf16.mxu0 %v1526
        %2524 = vmatmul.mubr.bf16.gmra.mxu0 %v1490
        %v2525 = vpop.f32.mrf.mxu0
        %v2526 = vadd.f32 %v2483, %v2525
        %v2527 = vpop.f32.mrf.mxu0
        %v2528 = vadd.f32 %v2485, %v2527
        %v2529 = vpop.f32.mrf.mxu0
        %v2530 = vadd.f32 %v2487, %v2529
        %v2531 = vpop.f32.mrf.mxu0
        %v2532 = vadd.f32 %v2489, %v2531
        %2533 = vdwg.mxu0
        %2534 = vmatprep.subr.bf16.mxu0 %v2239
        %2535 = vmatpush1.bf16.msra.mxu0 %v2238
        %2536 = vmatprep.subr.bf16.mxu0 %v2237
        %2537 = vmatpush1.bf16.msra.mxu0 %v2236
        %2538 = vmatprep.subr.bf16.mxu0 %v2235
        %2539 = vmatpush1.bf16.msra.mxu0 %v2234
        %2540 = vmatprep.subr.bf16.mxu0 %v2233
        %2541 = vmatpush1.bf16.msra.mxu0 %v2232
        %2542 = vmatprep.subr.bf16.mxu0 %v2231
        %2543 = vmatpush1.bf16.msra.mxu0 %v2230
        %2544 = vmatprep.subr.bf16.mxu0 %v2229
        %2545 = vmatpush1.bf16.msra.mxu0 %v2228
        %2546 = vmatprep.subr.bf16.mxu0 %v2227
        %2547 = vmatpush1.bf16.msra.mxu0 %v2226
        %2548 = vmatprep.subr.bf16.mxu0 %v2225
        %2549 = vmatpush1.bf16.msra.mxu0 %v2224
        %2550 = vmatprep.subr.bf16.mxu0 %v2255
        %2551 = vmatpush2.bf16.msra.mxu0 %v2254
        %2552 = vmatprep.subr.bf16.mxu0 %v2253
        %2553 = vmatpush2.bf16.msra.mxu0 %v2252
        %2554 = vmatprep.subr.bf16.mxu0 %v2251
        %2555 = vmatpush2.bf16.msra.mxu0 %v2250
        %2556 = vmatprep.subr.bf16.mxu0 %v2249
        %2557 = vmatpush2.bf16.msra.mxu0 %v2248
        %2558 = vmatprep.subr.bf16.mxu0 %v2247
        %2559 = vmatpush2.bf16.msra.mxu0 %v2246
        %2560 = vmatprep.subr.bf16.mxu0 %v2245
        %2561 = vmatpush2.bf16.msra.mxu0 %v2244
        %2562 = vmatprep.subr.bf16.mxu0 %v2243
        %2563 = vmatpush2.bf16.msra.mxu0 %v2242
        %2564 = vmatprep.subr.bf16.mxu0 %v2241
        %2565 = vmatpush2.bf16.msra.mxu0 %v2240
        %2566 = vmatprep.mubr.bf16.mxu0 %v1550
        %2567 = vmatmul.mubr.bf16.gmra.mxu0 %v1538
        %v2568 = vpop.f32.mrf.mxu0
        %v2569 = vadd.f32 %v2526, %v2568
        %v2570 = vpop.f32.mrf.mxu0
        %v2571 = vadd.f32 %v2528, %v2570
        %v2572 = vpop.f32.mrf.mxu0
        %v2573 = vadd.f32 %v2530, %v2572
        %v2574 = vpop.f32.mrf.mxu0
        %v2575 = vadd.f32 %v2532, %v2574
        %2576 = vdwg.mxu0
        %2577 = vmatprep.subr.bf16.mxu0 %v2271
        %2578 = vmatpush1.bf16.msra.mxu0 %v2270
        %2579 = vmatprep.subr.bf16.mxu0 %v2269
        %2580 = vmatpush1.bf16.msra.mxu0 %v2268
        %2581 = vmatprep.subr.bf16.mxu0 %v2267
        %2582 = vmatpush1.bf16.msra.mxu0 %v2266
        %2583 = vmatprep.subr.bf16.mxu0 %v2265
        %2584 = vmatpush1.bf16.msra.mxu0 %v2264
        %2585 = vmatprep.subr.bf16.mxu0 %v2263
        %2586 = vmatpush1.bf16.msra.mxu0 %v2262
        %2587 = vmatprep.subr.bf16.mxu0 %v2261
        %2588 = vmatpush1.bf16.msra.mxu0 %v2260
        %2589 = vmatprep.subr.bf16.mxu0 %v2259
        %2590 = vmatpush1.bf16.msra.mxu0 %v2258
        %2591 = vmatprep.subr.bf16.mxu0 %v2257
        %2592 = vmatpush1.bf16.msra.mxu0 %v2256
        %2593 = vmatprep.subr.bf16.mxu0 %v2287
        %2594 = vmatpush2.bf16.msra.mxu0 %v2286
        %2595 = vmatprep.subr.bf16.mxu0 %v2285
        %2596 = vmatpush2.bf16.msra.mxu0 %v2284
        %2597 = vmatprep.subr.bf16.mxu0 %v2283
        %2598 = vmatpush2.bf16.msra.mxu0 %v2282
        %2599 = vmatprep.subr.bf16.mxu0 %v2281
        %2600 = vmatpush2.bf16.msra.mxu0 %v2280
        %2601 = vmatprep.subr.bf16.mxu0 %v2279
        %2602 = vmatpush2.bf16.msra.mxu0 %v2278
        %2603 = vmatprep.subr.bf16.mxu0 %v2277
        %2604 = vmatpush2.bf16.msra.mxu0 %v2276
        %2605 = vmatprep.subr.bf16.mxu0 %v2275
        %2606 = vmatpush2.bf16.msra.mxu0 %v2274
        %2607 = vmatprep.subr.bf16.mxu0 %v2273
        %2608 = vmatpush2.bf16.msra.mxu0 %v2272
        %2609 = vmatprep.mubr.bf16.mxu0 %v1565
        %2610 = vmatmul.mubr.bf16.gmra.mxu0 %v1562
        %v2611 = vpop.f32.mrf.mxu0
        %v2612 = vadd.f32 %v2569, %v2611
        %v2613 = vpop.f32.mrf.mxu0
        %v2614 = vadd.f32 %v2571, %v2613
        %v2615 = vpop.f32.mrf.mxu0
        %v2616 = vadd.f32 %v2573, %v2615
        %v2617 = vpop.f32.mrf.mxu0
        %v2618 = vadd.f32 %v2575, %v2617
        %2619 = vdwg.mxu0
        %2620 = vmatprep.subr.bf16.mxu0 %v2303
        %2621 = vmatpush1.bf16.msra.mxu0 %v2302
        %2622 = vmatprep.subr.bf16.mxu0 %v2301
        %2623 = vmatpush1.bf16.msra.mxu0 %v2300
        %2624 = vmatprep.subr.bf16.mxu0 %v2299
        %2625 = vmatpush1.bf16.msra.mxu0 %v2298
        %2626 = vmatprep.subr.bf16.mxu0 %v2297
        %2627 = vmatpush1.bf16.msra.mxu0 %v2296
        %2628 = vmatprep.subr.bf16.mxu0 %v2295
        %2629 = vmatpush1.bf16.msra.mxu0 %v2294
        %2630 = vmatprep.subr.bf16.mxu0 %v2293
        %2631 = vmatpush1.bf16.msra.mxu0 %v2292
        %2632 = vmatprep.subr.bf16.mxu0 %v2291
        %2633 = vmatpush1.bf16.msra.mxu0 %v2290
        %2634 = vmatprep.subr.bf16.mxu0 %v2289
        %2635 = vmatpush1.bf16.msra.mxu0 %v2288
        %2636 = vmatprep.subr.bf16.mxu0 0
        %2637 = vmatpush2.bf16.msra.mxu0 0
        %2638 = vmatprep.subr.bf16.mxu0 0
        %2639 = vmatpush2.bf16.msra.mxu0 0
        %2640 = vmatprep.subr.bf16.mxu0 0
        %2641 = vmatpush2.bf16.msra.mxu0 0
        %2642 = vmatprep.subr.bf16.mxu0 0
        %2643 = vmatpush2.bf16.msra.mxu0 0
        %2644 = vmatprep.subr.bf16.mxu0 0
        %2645 = vmatpush2.bf16.msra.mxu0 0
        %2646 = vmatprep.subr.bf16.mxu0 0
        %2647 = vmatpush2.bf16.msra.mxu0 0
        %2648 = vmatprep.subr.bf16.mxu0 0
        %2649 = vmatpush2.bf16.msra.mxu0 0
        %2650 = vmatprep.subr.bf16.mxu0 0
        %2651 = vmatpush2.bf16.msra.mxu0 0
        %2652 = vmatprep.mubr.bf16.mxu0 0
        %2653 = vmatmul.mubr.bf16.gmra.mxu0 %v1568
        %v2654 = vpop.f32.mrf.mxu0
        %v2655 = vadd.f32 %v2612, %v2654
        %v2656 = vpop.f32.mrf.mxu0
        %v2657 = vadd.f32 %v2614, %v2656
        %v2658 = vpop.f32.mrf.mxu0
        %v2659 = vadd.f32 %v2616, %v2658
        %v2660 = vpop.f32.mrf.mxu0
        %v2661 = vadd.f32 %v2618, %v2660
        %2662 = vdwg.mxu0
        %vm2672 = vcmask 1046528
        %v2673 = vrot.slane %v254, 1
        %v2674 = vrot.slane %v257, 1
        %v2675 = vsel %vm2672, %v2673, %v2674
        %v2676 = vrot.slane %v255, 1
        %v2677 = vrot.slane %v258, 1
        %v2678 = vsel %vm2672, %v2676, %v2677
        %v2679 = vrot.slane %v256, 1
        %v2680 = vrot.slane %v259, 1
        %v2681 = vsel %vm2672, %v2679, %v2680
        %v2682 = vrot.slane %v260, 1
        %v2683 = vsel %vm2672, %v2674, %v2682
        %v2684 = vrot.slane %v261, 1
        %v2685 = vsel %vm2672, %v2677, %v2684
        %v2686 = vrot.slane %v262, 1
        %v2687 = vsel %vm2672, %v2680, %v2686
        %2688 = vrot.lane.b32.xlu0 %v2675, 112
        %v2689 = vpop.permute.xlu0 %2688
        %2690 = vrot.lane.b32.xlu0 %v2678, 112
        %v2691 = vpop.permute.xlu0 %2690
        %2692 = vrot.lane.b32.xlu0 %v2681, 112
        %v2693 = vpop.permute.xlu0 %2692
        %2694 = vrot.lane.b32.xlu0 %v2683, 112
        %v2695 = vpop.permute.xlu0 %2694
        %2696 = vrot.lane.b32.xlu0 %v2685, 112
        %v2697 = vpop.permute.xlu0 %2696
        %2698 = vrot.lane.b32.xlu0 %v2687, 112
        %v2699 = vpop.permute.xlu0 %2698
        %vm2700 = vcmask 916480
        %v2701 = vsel %vm2700, %v2689, %v2691
        %v2702 = vsel %vm2700, %v2691, %v2693
        %v2703 = vsel %vm2700, %v2695, %v2697
        %v2704 = vsel %vm2700, %v2697, %v2699
        %v2709 = vadd.f32 %v2655, %v2701
        %v2710 = vadd.f32 %v2657, %v2702
        %v2711 = vadd.f32 %v2659, %v2703
        %v2712 = vadd.f32 %v2661, %v2704
        %v2713 = vmax.f32 %v2709, 0.0
        %v2714 = vmax.f32 %v2710, 0.0
        %v2715 = vmax.f32 %v2711, 0.0
        %v2716 = vmax.f32 %v2712, 0.0
        %2717 = vst [vmem:[%s247] sm:$0xff] %v2713
        %2718 = vst [vmem:[%s247 + $0x8] sm:$0xff] %v2714
        %2719 = vst [vmem:[%s247 + $0x10] sm:$0xff] %v2715
        %2720 = vst [vmem:[%s247 + $0x18] sm:$0xff] %v2716
        %s2721 = sand.u32 %s139, 1
        %s2722 = scalar_lea.sflag [#allocation5], %s2721
        %s2723 = sand.u32 %s139, 1
        %s2724 = smul.addr %s2723, 32
        %s2725 = scalar_lea.vmem [#allocation8], %s2724
        // Predicated region
        $region49: #{tpu_custom_call.1} parent=39 // pred_check
          %p2726 = pneg %p149
        $region50: #{tpu_custom_call.1} parent=39 // pred_check_branch
          %2728 = sbr.rel (%p2726) target = $region52
        $region51: #{tpu_custom_call.1} parent=39 // pred_region
          %s2730 = ssub.s32 512, 512
          %2731 = vsyncadd %s2722, %s2730
          %s2732 = smul.addr %s21, 4
          %s2733 = smul.addr %s2732, 128
          %s2734 = scalar_lea.hbm %s5, %s2733
          %s2735 = sshll.u32 %s2725, 4
          %s2736 = int_to_ptr.vmem [resolvable:$true] %s2735
          %2741 = dma.vmem_to_hbm [thread:$0]  %s2736, 512, %s2734, %s2722, 256, 256, 16
        $region52: #{tpu_custom_call.1} parent=39 // pred_fallthru
          _
      $region40: #{tpu_custom_call.1} parent=5 // pred_fallthru
        _
      %p2742 = scmp.le.s32.totalorder 2, %s16
      // Predicated region
      $region53: #{tpu_custom_call.1} parent=5 // pred_check
        %p2743 = pneg %p2742
      $region54: #{tpu_custom_call.1} parent=5 // pred_check_branch
        %2745 = sbr.rel (%p2743) target = $region56
      $region55: #{tpu_custom_call.1} parent=5 // pred_region
        %s2746 = ssub.s32 %s16, 2
        // Predicated region
        $region57: #{tpu_custom_call.1} parent=55 // pred_check
          %p2747 = pneg %p155
        $region58: #{tpu_custom_call.1} parent=55 // pred_check_branch
          %2749 = sbr.rel (%p2747) target = $region60
        $region59: #{tpu_custom_call.1} parent=55 // pred_region
          %s2750 = sand.u32 %s140, 1
          %s2751 = scalar_lea.sflag [#allocation5], %s2750
          %s2752 = sand.u32 %s140, 1
          %s2753 = smul.addr %s2752, 32
          %s2754 = scalar_lea.vmem [#allocation8], %s2753
          %2755 = dma.done %s2751, 512
        $region60: #{tpu_custom_call.1} parent=55 // pred_fallthru
          _
      $region56: #{tpu_custom_call.1} parent=5 // pred_fallthru
        _
    $region6: #{tpu_custom_call.1} parent=1 // loop_footer
      %s20 = sadd.s32 1, %s16
    $region7: #{tpu_custom_call.1} parent=1 // loop_footer_branch
      %15 = sbr.rel target = $region3
    $region8: #{tpu_custom_call.1} parent=1 // loop_exit
      _
    %2756 = vsyncpa [#allocation4], 1
    %s2757 = scalar_lea.sflag [#allocation4], 1
    %2758 = vsyncpa %s2757, 1
    %2759 = vsyncpa [#allocation7], 1
    %2760 = vsyncpa [#allocation5], 1
    %s2761 = scalar_lea.sflag [#allocation5], 1
    %2762 = vsyncpa %s2761, 1

</llo_original>
